<compile_context>
chip_gen: v7x
topology: tpu7x:2x2x1
jax: 0.10.0
libtpu: 0.0.40
codegen_flags: <defaults>
</compile_context>

<pallas_src>
import functools

import jax
import jax.numpy as jnp
from jax.experimental import pallas as pl
from jax.experimental.pallas import tpu as pltpu

_N_UNITS = 4


def _hard_quant(x):
    """HardQuant(0, 4): clamp to [0, 4] and snap onto the 255-level grid."""
    return jnp.round(jnp.clip(x, 0.0, 4.0) * (255.0 / 4.0)) * (4.0 / 255.0)


# ----------------------------- fused DenseBlock kernel --------------------------------

def _dense_block_kernel(x_ref, w1_ref, b1_ref, w2_ref, b2_ref, m_ref, o_ref, *, H, W):
    """Whole DenseBlock for one batch element, channel-major (channels, H*W) layout.

    o_ref (2C, H*W) doubles as the dense-concat `comb` slab: rows [0:C] = input,
    unit u appends its c_mid output rows at [C + u*c_mid : C + (u+1)*c_mid].
    """
    C, HW = x_ref.shape
    C2 = o_ref.shape[0]
    c_mid = w1_ref.shape[0] // _N_UNITS

    # comb slab: input rows + zeroed tail (so the zero-padded 1x1 weight columns of
    # not-yet-computed units multiply exact zeros, never uninitialized VMEM).
    o_ref[0:C, :] = x_ref[...]
    o_ref[C:C2, :] = jnp.zeros((C2 - C, HW), o_ref.dtype)

    # Hoist all weight/mask loads out of the unit/tap loops (JAX does not CSE ref loads).
    w1_all = w1_ref[...]          # (4*c_mid, 2C)  quantized, BN scale folded in, zero-padded
    b1_all = b1_ref[...]          # (4*c_mid, 1)
    w2_all = w2_ref[...]          # (4*c_mid, 9)   quantized, BN scale folded in
    b2_all = b2_ref[...]          # (4*c_mid, 1)
    masks = m_ref[...]            # (9, H*W)       1.0 inside the image, 0.0 in the pad halo

    for u in range(_N_UNITS):
        c_lo, c_hi = u * c_mid, (u + 1) * c_mid

        # ---- 1x1 Conv2dQuant + folded BN + HardQuant on the MXU (lane-dense H*W) ------
        comb = o_ref[...]                                     # (2C, HW); unwritten rows are 0
        y = jnp.dot(w1_all[c_lo:c_hi, :], comb,
                    preferred_element_type=jnp.float32)       # (c_mid, HW)
        y = _hard_quant(y + b1_all[c_lo:c_hi, :])

        # ---- depthwise 3x3 Conv2dQuant (pad=1) + folded BN + HardQuant -----------------
        # tap (di, dj): out[p] += w2[:, tap] * y[p + (di-1)*W + (dj-1)], masked at borders.
        w2u = w2_all[c_lo:c_hi, :]                            # (c_mid, 9)
        acc = w2u[:, 4:5] * y                                 # centre tap: no roll, no mask
        for tap in range(9):
            if tap == 4:
                continue
            a, b = tap // 3 - 1, tap % 3 - 1
            shifted = pltpu.roll(y, (-(a * W + b)) % HW, axis=1)   # XLU lane rotation
            acc = acc + (w2u[:, tap:tap + 1] * masks[tap:tap + 1, :]) * shifted
        z = _hard_quant(acc + b2_all[c_lo:c_hi, :])

        # dense concat: append this unit's channels in place.
        o_ref[C + c_lo:C + c_hi, :] = z


# ----------------------------- weight prep (Conv2dQuant + BN fold) ---------------------

def _quantize_conv_weight(w):
    """Conv2dQuant weight preprocessing: per-output-channel abs-max 127-level grid."""
    wmax = jnp.max(jnp.abs(w), axis=(1, 2, 3), keepdims=True)
    return jnp.round(w / (wmax + 1e-12) * 127.0) * wmax / 127.0


def _bn_fold(gamma, beta, mean, var, eps=1e-5):
    s = gamma / jnp.sqrt(var + eps)
    return s, beta - mean * s


def _border_masks(H, W):
    """(9, H*W) validity masks for the 3x3 taps of a pad=1 depthwise conv."""
    p = jnp.arange(H * W, dtype=jnp.int32)
    h, w = p // W, p % W
    rows = []
    for tap in range(9):
        a, b = tap // 3 - 1, tap % 3 - 1
        ok = (h + a >= 0) & (h + a < H) & (w + b >= 0) & (w + b < W)
        rows.append(ok.astype(jnp.float32))
    return jnp.stack(rows, axis=0)


def prepare_dense_block_params(unit_params, channel_in, H, W):
    """One-time weight prep: quantize, fold eval-mode BN scale into weights, stack units."""
    C2 = 2 * channel_in
    w1_rows, b1_rows, w2_rows, b2_rows = [], [], [], []
    for raw in unit_params:
        c_mid, c_in = raw["w1"].shape[:2]
        w1q = _quantize_conv_weight(raw["w1"])[:, :, 0, 0]            # (c_mid, c_in)
        w2q = _quantize_conv_weight(raw["w2"])[:, 0, :, :].reshape(c_mid, 9)
        s1, b1 = _bn_fold(**raw["bn1"])
        s2, b2 = _bn_fold(**raw["bn2"])
        w1_rows.append(jnp.pad(w1q * s1[:, None], ((0, 0), (0, C2 - c_in))))
        b1_rows.append(b1[:, None])
        w2_rows.append(w2q * s2[:, None])
        b2_rows.append(b2[:, None])
    return dict(
        w1=jnp.concatenate(w1_rows, axis=0),                          # (4*c_mid, 2C)
        b1=jnp.concatenate(b1_rows, axis=0),                          # (4*c_mid, 1)
        w2=jnp.concatenate(w2_rows, axis=0),                          # (4*c_mid, 9)
        b2=jnp.concatenate(b2_rows, axis=0),                          # (4*c_mid, 1)
        masks=_border_masks(H, W),                                    # (9, H*W)
    )


# ----------------------------- DenseBlock forward (Pallas path) ------------------------

def dense_block_forward(x_nchw, prep):
    """DenseBlock.forward: (N, C, H, W) -> (N, 2C, H, W), one fused pallas_call."""
    N, C, H, W = x_nchw.shape
    HW, C2, c_mid = H * W, 2 * C, C // 4
    x = x_nchw.reshape(N, C, HW)                              # free reshape; already channel-major

    kernel = functools.partial(_dense_block_kernel, H=H, W=W)
    param_bytes = sum(int(p.size) * 4 for p in prep.values())
    cost = pl.CostEstimate(
        flops=N * _N_UNITS * (2 * c_mid * C2 * HW + 27 * c_mid * HW),
        transcendentals=0,
        bytes_accessed=4 * N * (C + C2) * HW + param_bytes)

    out = pl.pallas_call(
        kernel,
        out_shape=jax.ShapeDtypeStruct((N, C2, HW), jnp.float32),
        grid=(N,),
        in_specs=[
            pl.BlockSpec((None, C, HW), lambda n: (n, 0, 0)),     # per-image input slice
            pl.BlockSpec((C, C2), lambda n: (0, 0)),              # stacked 1x1 weights (VMEM resident)
            pl.BlockSpec((C, 1), lambda n: (0, 0)),
            pl.BlockSpec((C, 9), lambda n: (0, 0)),               # stacked depthwise taps
            pl.BlockSpec((C, 1), lambda n: (0, 0)),
            pl.BlockSpec((9, HW), lambda n: (0, 0)),              # depthwise border masks
        ],
        out_specs=pl.BlockSpec((None, C2, HW), lambda n: (n, 0, 0)),
        compiler_params=pltpu.CompilerParams(dimension_semantics=("parallel",)),
        cost_estimate=cost,
    )(x, prep["w1"], prep["b1"], prep["w2"], prep["b2"], prep["masks"])
    return out.reshape(N, C2, H, W)


# ----------------------------- pure-JAX reference --------------------------------------

def _ref_mobile_unit(x_nhwc, raw):
    n, h, w, _ = x_nhwc.shape
    w1q = _quantize_conv_weight(raw["w1"])[:, :, 0, 0]          # (c_mid, c_in)
    y = jnp.einsum("nhwc,dc->nhwd", x_nhwc, w1q, precision=jax.lax.Precision.HIGHEST)
    s1, b1 = _bn_fold(**raw["bn1"])
    y = _hard_quant(y * s1 + b1)

    w2q = _quantize_conv_weight(raw["w2"])[:, 0, :, :]          # (c_mid, 3, 3)
    yp = jnp.pad(y, ((0, 0), (1, 1), (1, 1), (0, 0)))
    z = jnp.zeros_like(y)
    for di in range(3):
        for dj in range(3):
            z = z + yp[:, di:di + h, dj:dj + w, :] * w2q[:, di, dj]
    s2, b2 = _bn_fold(**raw["bn2"])
    return _hard_quant(z * s2 + b2)


def dense_block_reference(x_nchw, unit_params):
    comb = jnp.transpose(x_nchw, (0, 2, 3, 1))
    for raw in unit_params:
        comb = jnp.concatenate([comb, _ref_mobile_unit(comb, raw)], axis=-1)
    return jnp.transpose(comb, (0, 3, 1, 2))


# ----------------------------- demo ----------------------------------------------------

def _make_unit_params(key, c_in, c_mid):
    ks = jax.random.split(key, 10)
    return dict(
        w1=0.3 * jax.random.normal(ks[0], (c_mid, c_in, 1, 1), jnp.float32),
        bn1=dict(gamma=1.0 + 0.1 * jax.random.normal(ks[1], (c_mid,), jnp.float32),
                 beta=0.3 + 0.1 * jax.random.normal(ks[2], (c_mid,), jnp.float32),
                 mean=0.1 * jax.random.normal(ks[3], (c_mid,), jnp.float32),
                 var=0.5 + jax.random.uniform(ks[4], (c_mid,), jnp.float32)),
        w2=0.3 * jax.random.normal(ks[5], (c_mid, 1, 3, 3), jnp.float32),
        bn2=dict(gamma=1.0 + 0.1 * jax.random.normal(ks[6], (c_mid,), jnp.float32),
                 beta=0.3 + 0.1 * jax.random.normal(ks[7], (c_mid,), jnp.float32),
                 mean=0.1 * jax.random.normal(ks[8], (c_mid,), jnp.float32),
                 var=0.5 + jax.random.uniform(ks[9], (c_mid,), jnp.float32)),
    )


if __name__ == "__main__":
    key = jax.random.PRNGKey(0)
    k_x, k_p = jax.random.split(key)

    # NCHW input, DenseBlock(channel_in=16): small demo shape.
    N, C, H, W = 2, 16, 16, 16
    c_mid = C // 4
    x = jax.random.uniform(k_x, (N, C, H, W), jnp.float32, 0.0, 2.0)

    c_ins = [C, C * 5 // 4, C * 6 // 4, C * 7 // 4]             # 16, 20, 24, 28
    unit_keys = jax.random.split(k_p, 4)
    unit_params = [_make_unit_params(unit_keys[i], c_ins[i], c_mid) for i in range(4)]

    # Weight quantization + BN fold + stacking: once, outside the jitted forward.
    prep = prepare_dense_block_params(unit_params, C, H, W)

    fwd = jax.jit(dense_block_forward)
    out = jax.block_until_ready(fwd(x, prep))

    ref = dense_block_reference(x, unit_params)

    assert out.shape == (N, 2 * C, H, W) and out.dtype == jnp.float32
    diff = jnp.abs(out - ref)
    # HardQuant snaps onto a 4/255 grid; allow a couple of one-bin flips from
    # MXU-vs-XLA f32 matmul rounding, reject anything structurally wrong.
    assert float(jnp.max(diff)) < 0.1, float(jnp.max(diff))
    assert float(jnp.mean(diff)) < 1e-2, float(jnp.mean(diff))

    print("KERNEL_OK")
</pallas_src>

<mosaic_0001>
module attributes {stable_mosaic.version = 11 : i64} {
  func.func @_dense_block_kernel(%arg0: i32, %arg1: memref<1x16x256xf32, #tpu.memory_space<vmem>>, %arg2: memref<16x32xf32, #tpu.memory_space<vmem>>, %arg3: memref<16x1xf32, #tpu.memory_space<vmem>>, %arg4: memref<16x9xf32, #tpu.memory_space<vmem>>, %arg5: memref<16x1xf32, #tpu.memory_space<vmem>>, %arg6: memref<9x256xf32, #tpu.memory_space<vmem>>, %arg7: memref<1x32x256xf32, #tpu.memory_space<vmem>>) attributes {dimension_semantics = [#tpu.dimension_semantics<parallel>], iteration_bounds = array<i64: 2>, scalar_prefetch = 0 : i64, scratch_operands = 0 : i64, tpu.core_type = #tpu.core_type<tc>, window_params = [{transform_indices = @transform_0, window_bounds = array<i64: 1, 16, 256>}, {pipeline_mode = #tpu.pipeline_mode<synchronous>, transform_indices = @transform_1, window_bounds = array<i64: 16, 32>}, {pipeline_mode = #tpu.pipeline_mode<synchronous>, transform_indices = @transform_2, window_bounds = array<i64: 16, 1>}, {pipeline_mode = #tpu.pipeline_mode<synchronous>, transform_indices = @transform_3, window_bounds = array<i64: 16, 9>}, {pipeline_mode = #tpu.pipeline_mode<synchronous>, transform_indices = @transform_4, window_bounds = array<i64: 16, 1>}, {pipeline_mode = #tpu.pipeline_mode<synchronous>, transform_indices = @transform_5, window_bounds = array<i64: 9, 256>}, {transform_indices = @transform_6, window_bounds = array<i64: 1, 32, 256>}]} {
    %c0 = arith.constant 0 : index
    %c0_0 = arith.constant 0 : index
    %c0_1 = arith.constant 0 : index
    %0 = vector.load %arg1[%c0, %c0_0, %c0_1] : memref<1x16x256xf32, #tpu.memory_space<vmem>>, vector<1x16x256xf32>
    %1 = vector.shape_cast %0 : vector<1x16x256xf32> to vector<16x256xf32>
    %c0_2 = arith.constant 0 : index
    %c0_3 = arith.constant 0 : index
    %c0_4 = arith.constant 0 : index
    %2 = vector.load %arg7[%c0_2, %c0_3, %c0_4] : memref<1x32x256xf32, #tpu.memory_space<vmem>>, vector<1x16x256xf32>
    %3 = vector.shape_cast %2 : vector<1x16x256xf32> to vector<16x256xf32>
    %4 = vector.shape_cast %1 : vector<16x256xf32> to vector<1x16x256xf32>
    tpu.vector_store %arg7[%c0_2, %c0_3, %c0_4], %4 {strides = array<i32>} : memref<1x32x256xf32, #tpu.memory_space<vmem>>, vector<1x16x256xf32>,
    %cst = arith.constant 0.000000e+00 : f32
    %5 = vector.broadcast %cst : f32 to vector<16x256xf32>
    %c0_5 = arith.constant 0 : index
    %c16 = arith.constant 16 : index
    %c0_6 = arith.constant 0 : index
    %6 = vector.load %arg7[%c0_5, %c16, %c0_6] : memref<1x32x256xf32, #tpu.memory_space<vmem>>, vector<1x16x256xf32>
    %7 = vector.shape_cast %6 : vector<1x16x256xf32> to vector<16x256xf32>
    %8 = vector.shape_cast %5 : vector<16x256xf32> to vector<1x16x256xf32>
    tpu.vector_store %arg7[%c0_5, %c16, %c0_6], %8 {strides = array<i32>} : memref<1x32x256xf32, #tpu.memory_space<vmem>>, vector<1x16x256xf32>,
    %c0_7 = arith.constant 0 : index
    %c0_8 = arith.constant 0 : index
    %9 = vector.load %arg2[%c0_7, %c0_8] : memref<16x32xf32, #tpu.memory_space<vmem>>, vector<16x32xf32>
    %c0_9 = arith.constant 0 : index
    %c0_10 = arith.constant 0 : index
    %10 = vector.load %arg3[%c0_9, %c0_10] : memref<16x1xf32, #tpu.memory_space<vmem>>, vector<16x1xf32>
    %c0_11 = arith.constant 0 : index
    %c0_12 = arith.constant 0 : index
    %11 = vector.load %arg4[%c0_11, %c0_12] : memref<16x9xf32, #tpu.memory_space<vmem>>, vector<16x9xf32>
    %c0_13 = arith.constant 0 : index
    %c0_14 = arith.constant 0 : index
    %12 = vector.load %arg5[%c0_13, %c0_14] : memref<16x1xf32, #tpu.memory_space<vmem>>, vector<16x1xf32>
    %c0_15 = arith.constant 0 : index
    %c0_16 = arith.constant 0 : index
    %13 = vector.load %arg6[%c0_15, %c0_16] : memref<9x256xf32, #tpu.memory_space<vmem>>, vector<9x256xf32>
    %c0_17 = arith.constant 0 : index
    %c0_18 = arith.constant 0 : index
    %c0_19 = arith.constant 0 : index
    %14 = vector.load %arg7[%c0_17, %c0_18, %c0_19] : memref<1x32x256xf32, #tpu.memory_space<vmem>>, vector<1x32x256xf32>
    %15 = vector.shape_cast %14 : vector<1x32x256xf32> to vector<32x256xf32>
    %16 = vector.extract_strided_slice %9 {offsets = [0, 0], sizes = [4, 32], strides = [1, 1]} : vector<16x32xf32> to vector<4x32xf32>
    %cst_20 = arith.constant dense<0.000000e+00> : vector<4x256xf32>
    %17 = tpu.matmul %16, %15, %cst_20 {dimension_numbers = #tpu.dot_dimension_numbers<[1], [0], [0], [1], [0, 0, 1, 1], [], []>} : vector<4x32xf32>, vector<32x256xf32>, vector<4x256xf32> -> vector<4x256xf32>
    %18 = vector.extract_strided_slice %10 {offsets = [0, 0], sizes = [4, 1], strides = [1, 1]} : vector<16x1xf32> to vector<4x1xf32>
    %19 = vector.broadcast %18 : vector<4x1xf32> to vector<4x256xf32>
    %20 = arith.addf %17, %19 : vector<4x256xf32>
    %cst_21 = arith.constant 0.000000e+00 : f32
    %cst_22 = arith.constant 4.000000e+00 : f32
    %21 = vector.broadcast %cst_21 : f32 to vector<4x256xf32>
    %22 = arith.maximumf %21, %20 : vector<4x256xf32>
    %23 = vector.broadcast %cst_22 : f32 to vector<4x256xf32>
    %24 = arith.minimumf %23, %22 : vector<4x256xf32>
    %cst_23 = arith.constant 6.375000e+01 : f32
    %25 = vector.broadcast %cst_23 : f32 to vector<4x256xf32>
    %26 = arith.mulf %24, %25 : vector<4x256xf32>
    %27 = math.roundeven %26 : vector<4x256xf32>
    %cst_24 = arith.constant 0.0156862754 : f32
    %28 = vector.broadcast %cst_24 : f32 to vector<4x256xf32>
    %29 = arith.mulf %27, %28 : vector<4x256xf32>
    %30 = vector.extract_strided_slice %11 {offsets = [0, 0], sizes = [4, 9], strides = [1, 1]} : vector<16x9xf32> to vector<4x9xf32>
    %31 = vector.extract_strided_slice %30 {offsets = [0, 4], sizes = [4, 1], strides = [1, 1]} : vector<4x9xf32> to vector<4x1xf32>
    %32 = vector.broadcast %31 : vector<4x1xf32> to vector<4x256xf32>
    %33 = arith.mulf %32, %29 : vector<4x256xf32>
    %c17_i32 = arith.constant 17 : i32
    %34 = tpu.dynamic_rotate %29 by %c17_i32 dim 1 : vector<4x256xf32>, i32 -> vector<4x256xf32>
    %35 = vector.extract_strided_slice %30 {offsets = [0, 0], sizes = [4, 1], strides = [1, 1]} : vector<4x9xf32> to vector<4x1xf32>
    %36 = vector.extract_strided_slice %13 {offsets = [0, 0], sizes = [1, 256], strides = [1, 1]} : vector<9x256xf32> to vector<1x256xf32>
    %37 = vector.broadcast %35 : vector<4x1xf32> to vector<4x256xf32>
    %38 = vector.broadcast %36 : vector<1x256xf32> to vector<4x256xf32>
    %39 = arith.mulf %37, %38 : vector<4x256xf32>
    %40 = arith.mulf %39, %34 : vector<4x256xf32>
    %41 = arith.addf %33, %40 : vector<4x256xf32>
    %c16_i32 = arith.constant 16 : i32
    %42 = tpu.dynamic_rotate %29 by %c16_i32 dim 1 : vector<4x256xf32>, i32 -> vector<4x256xf32>
    %43 = vector.extract_strided_slice %30 {offsets = [0, 1], sizes = [4, 1], strides = [1, 1]} : vector<4x9xf32> to vector<4x1xf32>
    %44 = vector.extract_strided_slice %13 {offsets = [1, 0], sizes = [1, 256], strides = [1, 1]} : vector<9x256xf32> to vector<1x256xf32>
    %45 = vector.broadcast %43 : vector<4x1xf32> to vector<4x256xf32>
    %46 = vector.broadcast %44 : vector<1x256xf32> to vector<4x256xf32>
    %47 = arith.mulf %45, %46 : vector<4x256xf32>
    %48 = arith.mulf %47, %42 : vector<4x256xf32>
    %49 = arith.addf %41, %48 : vector<4x256xf32>
    %c15_i32 = arith.constant 15 : i32
    %50 = tpu.dynamic_rotate %29 by %c15_i32 dim 1 : vector<4x256xf32>, i32 -> vector<4x256xf32>
    %51 = vector.extract_strided_slice %30 {offsets = [0, 2], sizes = [4, 1], strides = [1, 1]} : vector<4x9xf32> to vector<4x1xf32>
    %52 = vector.extract_strided_slice %13 {offsets = [2, 0], sizes = [1, 256], strides = [1, 1]} : vector<9x256xf32> to vector<1x256xf32>
    %53 = vector.broadcast %51 : vector<4x1xf32> to vector<4x256xf32>
    %54 = vector.broadcast %52 : vector<1x256xf32> to vector<4x256xf32>
    %55 = arith.mulf %53, %54 : vector<4x256xf32>
    %56 = arith.mulf %55, %50 : vector<4x256xf32>
    %57 = arith.addf %49, %56 : vector<4x256xf32>
    %c1_i32 = arith.constant 1 : i32
    %58 = tpu.dynamic_rotate %29 by %c1_i32 dim 1 : vector<4x256xf32>, i32 -> vector<4x256xf32>
    %59 = vector.extract_strided_slice %30 {offsets = [0, 3], sizes = [4, 1], strides = [1, 1]} : vector<4x9xf32> to vector<4x1xf32>
    %60 = vector.extract_strided_slice %13 {offsets = [3, 0], sizes = [1, 256], strides = [1, 1]} : vector<9x256xf32> to vector<1x256xf32>
    %61 = vector.broadcast %59 : vector<4x1xf32> to vector<4x256xf32>
    %62 = vector.broadcast %60 : vector<1x256xf32> to vector<4x256xf32>
    %63 = arith.mulf %61, %62 : vector<4x256xf32>
    %64 = arith.mulf %63, %58 : vector<4x256xf32>
    %65 = arith.addf %57, %64 : vector<4x256xf32>
    %c255_i32 = arith.constant 255 : i32
    %66 = tpu.dynamic_rotate %29 by %c255_i32 dim 1 : vector<4x256xf32>, i32 -> vector<4x256xf32>
    %67 = vector.extract_strided_slice %30 {offsets = [0, 5], sizes = [4, 1], strides = [1, 1]} : vector<4x9xf32> to vector<4x1xf32>
    %68 = vector.extract_strided_slice %13 {offsets = [5, 0], sizes = [1, 256], strides = [1, 1]} : vector<9x256xf32> to vector<1x256xf32>
    %69 = vector.broadcast %67 : vector<4x1xf32> to vector<4x256xf32>
    %70 = vector.broadcast %68 : vector<1x256xf32> to vector<4x256xf32>
    %71 = arith.mulf %69, %70 : vector<4x256xf32>
    %72 = arith.mulf %71, %66 : vector<4x256xf32>
    %73 = arith.addf %65, %72 : vector<4x256xf32>
    %c241_i32 = arith.constant 241 : i32
    %74 = tpu.dynamic_rotate %29 by %c241_i32 dim 1 : vector<4x256xf32>, i32 -> vector<4x256xf32>
    %75 = vector.extract_strided_slice %30 {offsets = [0, 6], sizes = [4, 1], strides = [1, 1]} : vector<4x9xf32> to vector<4x1xf32>
    %76 = vector.extract_strided_slice %13 {offsets = [6, 0], sizes = [1, 256], strides = [1, 1]} : vector<9x256xf32> to vector<1x256xf32>
    %77 = vector.broadcast %75 : vector<4x1xf32> to vector<4x256xf32>
    %78 = vector.broadcast %76 : vector<1x256xf32> to vector<4x256xf32>
    %79 = arith.mulf %77, %78 : vector<4x256xf32>
    %80 = arith.mulf %79, %74 : vector<4x256xf32>
    %81 = arith.addf %73, %80 : vector<4x256xf32>
    %c240_i32 = arith.constant 240 : i32
    %82 = tpu.dynamic_rotate %29 by %c240_i32 dim 1 : vector<4x256xf32>, i32 -> vector<4x256xf32>
    %83 = vector.extract_strided_slice %30 {offsets = [0, 7], sizes = [4, 1], strides = [1, 1]} : vector<4x9xf32> to vector<4x1xf32>
    %84 = vector.extract_strided_slice %13 {offsets = [7, 0], sizes = [1, 256], strides = [1, 1]} : vector<9x256xf32> to vector<1x256xf32>
    %85 = vector.broadcast %83 : vector<4x1xf32> to vector<4x256xf32>
    %86 = vector.broadcast %84 : vector<1x256xf32> to vector<4x256xf32>
    %87 = arith.mulf %85, %86 : vector<4x256xf32>
    %88 = arith.mulf %87, %82 : vector<4x256xf32>
    %89 = arith.addf %81, %88 : vector<4x256xf32>
    %c239_i32 = arith.constant 239 : i32
    %90 = tpu.dynamic_rotate %29 by %c239_i32 dim 1 : vector<4x256xf32>, i32 -> vector<4x256xf32>
    %91 = vector.extract_strided_slice %30 {offsets = [0, 8], sizes = [4, 1], strides = [1, 1]} : vector<4x9xf32> to vector<4x1xf32>
    %92 = vector.extract_strided_slice %13 {offsets = [8, 0], sizes = [1, 256], strides = [1, 1]} : vector<9x256xf32> to vector<1x256xf32>
    %93 = vector.broadcast %91 : vector<4x1xf32> to vector<4x256xf32>
    %94 = vector.broadcast %92 : vector<1x256xf32> to vector<4x256xf32>
    %95 = arith.mulf %93, %94 : vector<4x256xf32>
    %96 = arith.mulf %95, %90 : vector<4x256xf32>
    %97 = arith.addf %89, %96 : vector<4x256xf32>
    %98 = vector.extract_strided_slice %12 {offsets = [0, 0], sizes = [4, 1], strides = [1, 1]} : vector<16x1xf32> to vector<4x1xf32>
    %99 = vector.broadcast %98 : vector<4x1xf32> to vector<4x256xf32>
    %100 = arith.addf %97, %99 : vector<4x256xf32>
    %cst_25 = arith.constant 0.000000e+00 : f32
    %cst_26 = arith.constant 4.000000e+00 : f32
    %101 = vector.broadcast %cst_25 : f32 to vector<4x256xf32>
    %102 = arith.maximumf %101, %100 : vector<4x256xf32>
    %103 = vector.broadcast %cst_26 : f32 to vector<4x256xf32>
    %104 = arith.minimumf %103, %102 : vector<4x256xf32>
    %cst_27 = arith.constant 6.375000e+01 : f32
    %105 = vector.broadcast %cst_27 : f32 to vector<4x256xf32>
    %106 = arith.mulf %104, %105 : vector<4x256xf32>
    %107 = math.roundeven %106 : vector<4x256xf32>
    %cst_28 = arith.constant 0.0156862754 : f32
    %108 = vector.broadcast %cst_28 : f32 to vector<4x256xf32>
    %109 = arith.mulf %107, %108 : vector<4x256xf32>
    %c0_29 = arith.constant 0 : index
    %c16_30 = arith.constant 16 : index
    %c0_31 = arith.constant 0 : index
    %110 = vector.load %arg7[%c0_29, %c16_30, %c0_31] : memref<1x32x256xf32, #tpu.memory_space<vmem>>, vector<1x4x256xf32>
    %111 = vector.shape_cast %110 : vector<1x4x256xf32> to vector<4x256xf32>
    %112 = vector.shape_cast %109 : vector<4x256xf32> to vector<1x4x256xf32>
    tpu.vector_store %arg7[%c0_29, %c16_30, %c0_31], %112 {strides = array<i32>} : memref<1x32x256xf32, #tpu.memory_space<vmem>>, vector<1x4x256xf32>,
    %c0_32 = arith.constant 0 : index
    %c0_33 = arith.constant 0 : index
    %c0_34 = arith.constant 0 : index
    %113 = vector.load %arg7[%c0_32, %c0_33, %c0_34] : memref<1x32x256xf32, #tpu.memory_space<vmem>>, vector<1x32x256xf32>
    %114 = vector.shape_cast %113 : vector<1x32x256xf32> to vector<32x256xf32>
    %115 = vector.extract_strided_slice %9 {offsets = [4, 0], sizes = [4, 32], strides = [1, 1]} : vector<16x32xf32> to vector<4x32xf32>
    %cst_35 = arith.constant dense<0.000000e+00> : vector<4x256xf32>
    %116 = tpu.matmul %115, %114, %cst_35 {dimension_numbers = #tpu.dot_dimension_numbers<[1], [0], [0], [1], [0, 0, 1, 1], [], []>} : vector<4x32xf32>, vector<32x256xf32>, vector<4x256xf32> -> vector<4x256xf32>
    %117 = vector.extract_strided_slice %10 {offsets = [4, 0], sizes = [4, 1], strides = [1, 1]} : vector<16x1xf32> to vector<4x1xf32>
    %118 = vector.broadcast %117 : vector<4x1xf32> to vector<4x256xf32>
    %119 = arith.addf %116, %118 : vector<4x256xf32>
    %cst_36 = arith.constant 0.000000e+00 : f32
    %cst_37 = arith.constant 4.000000e+00 : f32
    %120 = vector.broadcast %cst_36 : f32 to vector<4x256xf32>
    %121 = arith.maximumf %120, %119 : vector<4x256xf32>
    %122 = vector.broadcast %cst_37 : f32 to vector<4x256xf32>
    %123 = arith.minimumf %122, %121 : vector<4x256xf32>
    %cst_38 = arith.constant 6.375000e+01 : f32
    %124 = vector.broadcast %cst_38 : f32 to vector<4x256xf32>
    %125 = arith.mulf %123, %124 : vector<4x256xf32>
    %126 = math.roundeven %125 : vector<4x256xf32>
    %cst_39 = arith.constant 0.0156862754 : f32
    %127 = vector.broadcast %cst_39 : f32 to vector<4x256xf32>
    %128 = arith.mulf %126, %127 : vector<4x256xf32>
    %129 = vector.extract_strided_slice %11 {offsets = [4, 0], sizes = [4, 9], strides = [1, 1]} : vector<16x9xf32> to vector<4x9xf32>
    %130 = vector.extract_strided_slice %129 {offsets = [0, 4], sizes = [4, 1], strides = [1, 1]} : vector<4x9xf32> to vector<4x1xf32>
    %131 = vector.broadcast %130 : vector<4x1xf32> to vector<4x256xf32>
    %132 = arith.mulf %131, %128 : vector<4x256xf32>
    %c17_i32_40 = arith.constant 17 : i32
    %133 = tpu.dynamic_rotate %128 by %c17_i32_40 dim 1 : vector<4x256xf32>, i32 -> vector<4x256xf32>
    %134 = vector.extract_strided_slice %129 {offsets = [0, 0], sizes = [4, 1], strides = [1, 1]} : vector<4x9xf32> to vector<4x1xf32>
    %135 = vector.extract_strided_slice %13 {offsets = [0, 0], sizes = [1, 256], strides = [1, 1]} : vector<9x256xf32> to vector<1x256xf32>
    %136 = vector.broadcast %134 : vector<4x1xf32> to vector<4x256xf32>
    %137 = vector.broadcast %135 : vector<1x256xf32> to vector<4x256xf32>
    %138 = arith.mulf %136, %137 : vector<4x256xf32>
    %139 = arith.mulf %138, %133 : vector<4x256xf32>
    %140 = arith.addf %132, %139 : vector<4x256xf32>
    %c16_i32_41 = arith.constant 16 : i32
    %141 = tpu.dynamic_rotate %128 by %c16_i32_41 dim 1 : vector<4x256xf32>, i32 -> vector<4x256xf32>
    %142 = vector.extract_strided_slice %129 {offsets = [0, 1], sizes = [4, 1], strides = [1, 1]} : vector<4x9xf32> to vector<4x1xf32>
    %143 = vector.extract_strided_slice %13 {offsets = [1, 0], sizes = [1, 256], strides = [1, 1]} : vector<9x256xf32> to vector<1x256xf32>
    %144 = vector.broadcast %142 : vector<4x1xf32> to vector<4x256xf32>
    %145 = vector.broadcast %143 : vector<1x256xf32> to vector<4x256xf32>
    %146 = arith.mulf %144, %145 : vector<4x256xf32>
    %147 = arith.mulf %146, %141 : vector<4x256xf32>
    %148 = arith.addf %140, %147 : vector<4x256xf32>
    %c15_i32_42 = arith.constant 15 : i32
    %149 = tpu.dynamic_rotate %128 by %c15_i32_42 dim 1 : vector<4x256xf32>, i32 -> vector<4x256xf32>
    %150 = vector.extract_strided_slice %129 {offsets = [0, 2], sizes = [4, 1], strides = [1, 1]} : vector<4x9xf32> to vector<4x1xf32>
    %151 = vector.extract_strided_slice %13 {offsets = [2, 0], sizes = [1, 256], strides = [1, 1]} : vector<9x256xf32> to vector<1x256xf32>
    %152 = vector.broadcast %150 : vector<4x1xf32> to vector<4x256xf32>
    %153 = vector.broadcast %151 : vector<1x256xf32> to vector<4x256xf32>
    %154 = arith.mulf %152, %153 : vector<4x256xf32>
    %155 = arith.mulf %154, %149 : vector<4x256xf32>
    %156 = arith.addf %148, %155 : vector<4x256xf32>
    %c1_i32_43 = arith.constant 1 : i32
    %157 = tpu.dynamic_rotate %128 by %c1_i32_43 dim 1 : vector<4x256xf32>, i32 -> vector<4x256xf32>
    %158 = vector.extract_strided_slice %129 {offsets = [0, 3], sizes = [4, 1], strides = [1, 1]} : vector<4x9xf32> to vector<4x1xf32>
    %159 = vector.extract_strided_slice %13 {offsets = [3, 0], sizes = [1, 256], strides = [1, 1]} : vector<9x256xf32> to vector<1x256xf32>
    %160 = vector.broadcast %158 : vector<4x1xf32> to vector<4x256xf32>
    %161 = vector.broadcast %159 : vector<1x256xf32> to vector<4x256xf32>
    %162 = arith.mulf %160, %161 : vector<4x256xf32>
    %163 = arith.mulf %162, %157 : vector<4x256xf32>
    %164 = arith.addf %156, %163 : vector<4x256xf32>
    %c255_i32_44 = arith.constant 255 : i32
    %165 = tpu.dynamic_rotate %128 by %c255_i32_44 dim 1 : vector<4x256xf32>, i32 -> vector<4x256xf32>
    %166 = vector.extract_strided_slice %129 {offsets = [0, 5], sizes = [4, 1], strides = [1, 1]} : vector<4x9xf32> to vector<4x1xf32>
    %167 = vector.extract_strided_slice %13 {offsets = [5, 0], sizes = [1, 256], strides = [1, 1]} : vector<9x256xf32> to vector<1x256xf32>
    %168 = vector.broadcast %166 : vector<4x1xf32> to vector<4x256xf32>
    %169 = vector.broadcast %167 : vector<1x256xf32> to vector<4x256xf32>
    %170 = arith.mulf %168, %169 : vector<4x256xf32>
    %171 = arith.mulf %170, %165 : vector<4x256xf32>
    %172 = arith.addf %164, %171 : vector<4x256xf32>
    %c241_i32_45 = arith.constant 241 : i32
    %173 = tpu.dynamic_rotate %128 by %c241_i32_45 dim 1 : vector<4x256xf32>, i32 -> vector<4x256xf32>
    %174 = vector.extract_strided_slice %129 {offsets = [0, 6], sizes = [4, 1], strides = [1, 1]} : vector<4x9xf32> to vector<4x1xf32>
    %175 = vector.extract_strided_slice %13 {offsets = [6, 0], sizes = [1, 256], strides = [1, 1]} : vector<9x256xf32> to vector<1x256xf32>
    %176 = vector.broadcast %174 : vector<4x1xf32> to vector<4x256xf32>
    %177 = vector.broadcast %175 : vector<1x256xf32> to vector<4x256xf32>
    %178 = arith.mulf %176, %177 : vector<4x256xf32>
    %179 = arith.mulf %178, %173 : vector<4x256xf32>
    %180 = arith.addf %172, %179 : vector<4x256xf32>
    %c240_i32_46 = arith.constant 240 : i32
    %181 = tpu.dynamic_rotate %128 by %c240_i32_46 dim 1 : vector<4x256xf32>, i32 -> vector<4x256xf32>
    %182 = vector.extract_strided_slice %129 {offsets = [0, 7], sizes = [4, 1], strides = [1, 1]} : vector<4x9xf32> to vector<4x1xf32>
    %183 = vector.extract_strided_slice %13 {offsets = [7, 0], sizes = [1, 256], strides = [1, 1]} : vector<9x256xf32> to vector<1x256xf32>
    %184 = vector.broadcast %182 : vector<4x1xf32> to vector<4x256xf32>
    %185 = vector.broadcast %183 : vector<1x256xf32> to vector<4x256xf32>
    %186 = arith.mulf %184, %185 : vector<4x256xf32>
    %187 = arith.mulf %186, %181 : vector<4x256xf32>
    %188 = arith.addf %180, %187 : vector<4x256xf32>
    %c239_i32_47 = arith.constant 239 : i32
    %189 = tpu.dynamic_rotate %128 by %c239_i32_47 dim 1 : vector<4x256xf32>, i32 -> vector<4x256xf32>
    %190 = vector.extract_strided_slice %129 {offsets = [0, 8], sizes = [4, 1], strides = [1, 1]} : vector<4x9xf32> to vector<4x1xf32>
    %191 = vector.extract_strided_slice %13 {offsets = [8, 0], sizes = [1, 256], strides = [1, 1]} : vector<9x256xf32> to vector<1x256xf32>
    %192 = vector.broadcast %190 : vector<4x1xf32> to vector<4x256xf32>
    %193 = vector.broadcast %191 : vector<1x256xf32> to vector<4x256xf32>
    %194 = arith.mulf %192, %193 : vector<4x256xf32>
    %195 = arith.mulf %194, %189 : vector<4x256xf32>
    %196 = arith.addf %188, %195 : vector<4x256xf32>
    %197 = vector.extract_strided_slice %12 {offsets = [4, 0], sizes = [4, 1], strides = [1, 1]} : vector<16x1xf32> to vector<4x1xf32>
    %198 = vector.broadcast %197 : vector<4x1xf32> to vector<4x256xf32>
    %199 = arith.addf %196, %198 : vector<4x256xf32>
    %cst_48 = arith.constant 0.000000e+00 : f32
    %cst_49 = arith.constant 4.000000e+00 : f32
    %200 = vector.broadcast %cst_48 : f32 to vector<4x256xf32>
    %201 = arith.maximumf %200, %199 : vector<4x256xf32>
    %202 = vector.broadcast %cst_49 : f32 to vector<4x256xf32>
    %203 = arith.minimumf %202, %201 : vector<4x256xf32>
    %cst_50 = arith.constant 6.375000e+01 : f32
    %204 = vector.broadcast %cst_50 : f32 to vector<4x256xf32>
    %205 = arith.mulf %203, %204 : vector<4x256xf32>
    %206 = math.roundeven %205 : vector<4x256xf32>
    %cst_51 = arith.constant 0.0156862754 : f32
    %207 = vector.broadcast %cst_51 : f32 to vector<4x256xf32>
    %208 = arith.mulf %206, %207 : vector<4x256xf32>
    %c0_52 = arith.constant 0 : index
    %c20 = arith.constant 20 : index
    %c0_53 = arith.constant 0 : index
    %209 = vector.load %arg7[%c0_52, %c20, %c0_53] : memref<1x32x256xf32, #tpu.memory_space<vmem>>, vector<1x4x256xf32>
    %210 = vector.shape_cast %209 : vector<1x4x256xf32> to vector<4x256xf32>
    %211 = vector.shape_cast %208 : vector<4x256xf32> to vector<1x4x256xf32>
    tpu.vector_store %arg7[%c0_52, %c20, %c0_53], %211 {strides = array<i32>} : memref<1x32x256xf32, #tpu.memory_space<vmem>>, vector<1x4x256xf32>,
    %c0_54 = arith.constant 0 : index
    %c0_55 = arith.constant 0 : index
    %c0_56 = arith.constant 0 : index
    %212 = vector.load %arg7[%c0_54, %c0_55, %c0_56] : memref<1x32x256xf32, #tpu.memory_space<vmem>>, vector<1x32x256xf32>
    %213 = vector.shape_cast %212 : vector<1x32x256xf32> to vector<32x256xf32>
    %214 = vector.extract_strided_slice %9 {offsets = [8, 0], sizes = [4, 32], strides = [1, 1]} : vector<16x32xf32> to vector<4x32xf32>
    %cst_57 = arith.constant dense<0.000000e+00> : vector<4x256xf32>
    %215 = tpu.matmul %214, %213, %cst_57 {dimension_numbers = #tpu.dot_dimension_numbers<[1], [0], [0], [1], [0, 0, 1, 1], [], []>} : vector<4x32xf32>, vector<32x256xf32>, vector<4x256xf32> -> vector<4x256xf32>
    %216 = vector.extract_strided_slice %10 {offsets = [8, 0], sizes = [4, 1], strides = [1, 1]} : vector<16x1xf32> to vector<4x1xf32>
    %217 = vector.broadcast %216 : vector<4x1xf32> to vector<4x256xf32>
    %218 = arith.addf %215, %217 : vector<4x256xf32>
    %cst_58 = arith.constant 0.000000e+00 : f32
    %cst_59 = arith.constant 4.000000e+00 : f32
    %219 = vector.broadcast %cst_58 : f32 to vector<4x256xf32>
    %220 = arith.maximumf %219, %218 : vector<4x256xf32>
    %221 = vector.broadcast %cst_59 : f32 to vector<4x256xf32>
    %222 = arith.minimumf %221, %220 : vector<4x256xf32>
    %cst_60 = arith.constant 6.375000e+01 : f32
    %223 = vector.broadcast %cst_60 : f32 to vector<4x256xf32>
    %224 = arith.mulf %222, %223 : vector<4x256xf32>
    %225 = math.roundeven %224 : vector<4x256xf32>
    %cst_61 = arith.constant 0.0156862754 : f32
    %226 = vector.broadcast %cst_61 : f32 to vector<4x256xf32>
    %227 = arith.mulf %225, %226 : vector<4x256xf32>
    %228 = vector.extract_strided_slice %11 {offsets = [8, 0], sizes = [4, 9], strides = [1, 1]} : vector<16x9xf32> to vector<4x9xf32>
    %229 = vector.extract_strided_slice %228 {offsets = [0, 4], sizes = [4, 1], strides = [1, 1]} : vector<4x9xf32> to vector<4x1xf32>
    %230 = vector.broadcast %229 : vector<4x1xf32> to vector<4x256xf32>
    %231 = arith.mulf %230, %227 : vector<4x256xf32>
    %c17_i32_62 = arith.constant 17 : i32
    %232 = tpu.dynamic_rotate %227 by %c17_i32_62 dim 1 : vector<4x256xf32>, i32 -> vector<4x256xf32>
    %233 = vector.extract_strided_slice %228 {offsets = [0, 0], sizes = [4, 1], strides = [1, 1]} : vector<4x9xf32> to vector<4x1xf32>
    %234 = vector.extract_strided_slice %13 {offsets = [0, 0], sizes = [1, 256], strides = [1, 1]} : vector<9x256xf32> to vector<1x256xf32>
    %235 = vector.broadcast %233 : vector<4x1xf32> to vector<4x256xf32>
    %236 = vector.broadcast %234 : vector<1x256xf32> to vector<4x256xf32>
    %237 = arith.mulf %235, %236 : vector<4x256xf32>
    %238 = arith.mulf %237, %232 : vector<4x256xf32>
    %239 = arith.addf %231, %238 : vector<4x256xf32>
    %c16_i32_63 = arith.constant 16 : i32
    %240 = tpu.dynamic_rotate %227 by %c16_i32_63 dim 1 : vector<4x256xf32>, i32 -> vector<4x256xf32>
    %241 = vector.extract_strided_slice %228 {offsets = [0, 1], sizes = [4, 1], strides = [1, 1]} : vector<4x9xf32> to vector<4x1xf32>
    %242 = vector.extract_strided_slice %13 {offsets = [1, 0], sizes = [1, 256], strides = [1, 1]} : vector<9x256xf32> to vector<1x256xf32>
    %243 = vector.broadcast %241 : vector<4x1xf32> to vector<4x256xf32>
    %244 = vector.broadcast %242 : vector<1x256xf32> to vector<4x256xf32>
    %245 = arith.mulf %243, %244 : vector<4x256xf32>
    %246 = arith.mulf %245, %240 : vector<4x256xf32>
    %247 = arith.addf %239, %246 : vector<4x256xf32>
    %c15_i32_64 = arith.constant 15 : i32
    %248 = tpu.dynamic_rotate %227 by %c15_i32_64 dim 1 : vector<4x256xf32>, i32 -> vector<4x256xf32>
    %249 = vector.extract_strided_slice %228 {offsets = [0, 2], sizes = [4, 1], strides = [1, 1]} : vector<4x9xf32> to vector<4x1xf32>
    %250 = vector.extract_strided_slice %13 {offsets = [2, 0], sizes = [1, 256], strides = [1, 1]} : vector<9x256xf32> to vector<1x256xf32>
    %251 = vector.broadcast %249 : vector<4x1xf32> to vector<4x256xf32>
    %252 = vector.broadcast %250 : vector<1x256xf32> to vector<4x256xf32>
    %253 = arith.mulf %251, %252 : vector<4x256xf32>
    %254 = arith.mulf %253, %248 : vector<4x256xf32>
    %255 = arith.addf %247, %254 : vector<4x256xf32>
    %c1_i32_65 = arith.constant 1 : i32
    %256 = tpu.dynamic_rotate %227 by %c1_i32_65 dim 1 : vector<4x256xf32>, i32 -> vector<4x256xf32>
    %257 = vector.extract_strided_slice %228 {offsets = [0, 3], sizes = [4, 1], strides = [1, 1]} : vector<4x9xf32> to vector<4x1xf32>
    %258 = vector.extract_strided_slice %13 {offsets = [3, 0], sizes = [1, 256], strides = [1, 1]} : vector<9x256xf32> to vector<1x256xf32>
    %259 = vector.broadcast %257 : vector<4x1xf32> to vector<4x256xf32>
    %260 = vector.broadcast %258 : vector<1x256xf32> to vector<4x256xf32>
    %261 = arith.mulf %259, %260 : vector<4x256xf32>
    %262 = arith.mulf %261, %256 : vector<4x256xf32>
    %263 = arith.addf %255, %262 : vector<4x256xf32>
    %c255_i32_66 = arith.constant 255 : i32
    %264 = tpu.dynamic_rotate %227 by %c255_i32_66 dim 1 : vector<4x256xf32>, i32 -> vector<4x256xf32>
    %265 = vector.extract_strided_slice %228 {offsets = [0, 5], sizes = [4, 1], strides = [1, 1]} : vector<4x9xf32> to vector<4x1xf32>
    %266 = vector.extract_strided_slice %13 {offsets = [5, 0], sizes = [1, 256], strides = [1, 1]} : vector<9x256xf32> to vector<1x256xf32>
    %267 = vector.broadcast %265 : vector<4x1xf32> to vector<4x256xf32>
    %268 = vector.broadcast %266 : vector<1x256xf32> to vector<4x256xf32>
    %269 = arith.mulf %267, %268 : vector<4x256xf32>
    %270 = arith.mulf %269, %264 : vector<4x256xf32>
    %271 = arith.addf %263, %270 : vector<4x256xf32>
    %c241_i32_67 = arith.constant 241 : i32
    %272 = tpu.dynamic_rotate %227 by %c241_i32_67 dim 1 : vector<4x256xf32>, i32 -> vector<4x256xf32>
    %273 = vector.extract_strided_slice %228 {offsets = [0, 6], sizes = [4, 1], strides = [1, 1]} : vector<4x9xf32> to vector<4x1xf32>
    %274 = vector.extract_strided_slice %13 {offsets = [6, 0], sizes = [1, 256], strides = [1, 1]} : vector<9x256xf32> to vector<1x256xf32>
    %275 = vector.broadcast %273 : vector<4x1xf32> to vector<4x256xf32>
    %276 = vector.broadcast %274 : vector<1x256xf32> to vector<4x256xf32>
    %277 = arith.mulf %275, %276 : vector<4x256xf32>
    %278 = arith.mulf %277, %272 : vector<4x256xf32>
    %279 = arith.addf %271, %278 : vector<4x256xf32>
    %c240_i32_68 = arith.constant 240 : i32
    %280 = tpu.dynamic_rotate %227 by %c240_i32_68 dim 1 : vector<4x256xf32>, i32 -> vector<4x256xf32>
    %281 = vector.extract_strided_slice %228 {offsets = [0, 7], sizes = [4, 1], strides = [1, 1]} : vector<4x9xf32> to vector<4x1xf32>
    %282 = vector.extract_strided_slice %13 {offsets = [7, 0], sizes = [1, 256], strides = [1, 1]} : vector<9x256xf32> to vector<1x256xf32>
    %283 = vector.broadcast %281 : vector<4x1xf32> to vector<4x256xf32>
    %284 = vector.broadcast %282 : vector<1x256xf32> to vector<4x256xf32>
    %285 = arith.mulf %283, %284 : vector<4x256xf32>
    %286 = arith.mulf %285, %280 : vector<4x256xf32>
    %287 = arith.addf %279, %286 : vector<4x256xf32>
    %c239_i32_69 = arith.constant 239 : i32
    %288 = tpu.dynamic_rotate %227 by %c239_i32_69 dim 1 : vector<4x256xf32>, i32 -> vector<4x256xf32>
    %289 = vector.extract_strided_slice %228 {offsets = [0, 8], sizes = [4, 1], strides = [1, 1]} : vector<4x9xf32> to vector<4x1xf32>
    %290 = vector.extract_strided_slice %13 {offsets = [8, 0], sizes = [1, 256], strides = [1, 1]} : vector<9x256xf32> to vector<1x256xf32>
    %291 = vector.broadcast %289 : vector<4x1xf32> to vector<4x256xf32>
    %292 = vector.broadcast %290 : vector<1x256xf32> to vector<4x256xf32>
    %293 = arith.mulf %291, %292 : vector<4x256xf32>
    %294 = arith.mulf %293, %288 : vector<4x256xf32>
    %295 = arith.addf %287, %294 : vector<4x256xf32>
    %296 = vector.extract_strided_slice %12 {offsets = [8, 0], sizes = [4, 1], strides = [1, 1]} : vector<16x1xf32> to vector<4x1xf32>
    %297 = vector.broadcast %296 : vector<4x1xf32> to vector<4x256xf32>
    %298 = arith.addf %295, %297 : vector<4x256xf32>
    %cst_70 = arith.constant 0.000000e+00 : f32
    %cst_71 = arith.constant 4.000000e+00 : f32
    %299 = vector.broadcast %cst_70 : f32 to vector<4x256xf32>
    %300 = arith.maximumf %299, %298 : vector<4x256xf32>
    %301 = vector.broadcast %cst_71 : f32 to vector<4x256xf32>
    %302 = arith.minimumf %301, %300 : vector<4x256xf32>
    %cst_72 = arith.constant 6.375000e+01 : f32
    %303 = vector.broadcast %cst_72 : f32 to vector<4x256xf32>
    %304 = arith.mulf %302, %303 : vector<4x256xf32>
    %305 = math.roundeven %304 : vector<4x256xf32>
    %cst_73 = arith.constant 0.0156862754 : f32
    %306 = vector.broadcast %cst_73 : f32 to vector<4x256xf32>
    %307 = arith.mulf %305, %306 : vector<4x256xf32>
    %c0_74 = arith.constant 0 : index
    %c24 = arith.constant 24 : index
    %c0_75 = arith.constant 0 : index
    %308 = vector.load %arg7[%c0_74, %c24, %c0_75] : memref<1x32x256xf32, #tpu.memory_space<vmem>>, vector<1x4x256xf32>
    %309 = vector.shape_cast %308 : vector<1x4x256xf32> to vector<4x256xf32>
    %310 = vector.shape_cast %307 : vector<4x256xf32> to vector<1x4x256xf32>
    tpu.vector_store %arg7[%c0_74, %c24, %c0_75], %310 {strides = array<i32>} : memref<1x32x256xf32, #tpu.memory_space<vmem>>, vector<1x4x256xf32>,
    %c0_76 = arith.constant 0 : index
    %c0_77 = arith.constant 0 : index
    %c0_78 = arith.constant 0 : index
    %311 = vector.load %arg7[%c0_76, %c0_77, %c0_78] : memref<1x32x256xf32, #tpu.memory_space<vmem>>, vector<1x32x256xf32>
    %312 = vector.shape_cast %311 : vector<1x32x256xf32> to vector<32x256xf32>
    %313 = vector.extract_strided_slice %9 {offsets = [12, 0], sizes = [4, 32], strides = [1, 1]} : vector<16x32xf32> to vector<4x32xf32>
    %cst_79 = arith.constant dense<0.000000e+00> : vector<4x256xf32>
    %314 = tpu.matmul %313, %312, %cst_79 {dimension_numbers = #tpu.dot_dimension_numbers<[1], [0], [0], [1], [0, 0, 1, 1], [], []>} : vector<4x32xf32>, vector<32x256xf32>, vector<4x256xf32> -> vector<4x256xf32>
    %315 = vector.extract_strided_slice %10 {offsets = [12, 0], sizes = [4, 1], strides = [1, 1]} : vector<16x1xf32> to vector<4x1xf32>
    %316 = vector.broadcast %315 : vector<4x1xf32> to vector<4x256xf32>
    %317 = arith.addf %314, %316 : vector<4x256xf32>
    %cst_80 = arith.constant 0.000000e+00 : f32
    %cst_81 = arith.constant 4.000000e+00 : f32
    %318 = vector.broadcast %cst_80 : f32 to vector<4x256xf32>
    %319 = arith.maximumf %318, %317 : vector<4x256xf32>
    %320 = vector.broadcast %cst_81 : f32 to vector<4x256xf32>
    %321 = arith.minimumf %320, %319 : vector<4x256xf32>
    %cst_82 = arith.constant 6.375000e+01 : f32
    %322 = vector.broadcast %cst_82 : f32 to vector<4x256xf32>
    %323 = arith.mulf %321, %322 : vector<4x256xf32>
    %324 = math.roundeven %323 : vector<4x256xf32>
    %cst_83 = arith.constant 0.0156862754 : f32
    %325 = vector.broadcast %cst_83 : f32 to vector<4x256xf32>
    %326 = arith.mulf %324, %325 : vector<4x256xf32>
    %327 = vector.extract_strided_slice %11 {offsets = [12, 0], sizes = [4, 9], strides = [1, 1]} : vector<16x9xf32> to vector<4x9xf32>
    %328 = vector.extract_strided_slice %327 {offsets = [0, 4], sizes = [4, 1], strides = [1, 1]} : vector<4x9xf32> to vector<4x1xf32>
    %329 = vector.broadcast %328 : vector<4x1xf32> to vector<4x256xf32>
    %330 = arith.mulf %329, %326 : vector<4x256xf32>
    %c17_i32_84 = arith.constant 17 : i32
    %331 = tpu.dynamic_rotate %326 by %c17_i32_84 dim 1 : vector<4x256xf32>, i32 -> vector<4x256xf32>
    %332 = vector.extract_strided_slice %327 {offsets = [0, 0], sizes = [4, 1], strides = [1, 1]} : vector<4x9xf32> to vector<4x1xf32>
    %333 = vector.extract_strided_slice %13 {offsets = [0, 0], sizes = [1, 256], strides = [1, 1]} : vector<9x256xf32> to vector<1x256xf32>
    %334 = vector.broadcast %332 : vector<4x1xf32> to vector<4x256xf32>
    %335 = vector.broadcast %333 : vector<1x256xf32> to vector<4x256xf32>
    %336 = arith.mulf %334, %335 : vector<4x256xf32>
    %337 = arith.mulf %336, %331 : vector<4x256xf32>
    %338 = arith.addf %330, %337 : vector<4x256xf32>
    %c16_i32_85 = arith.constant 16 : i32
    %339 = tpu.dynamic_rotate %326 by %c16_i32_85 dim 1 : vector<4x256xf32>, i32 -> vector<4x256xf32>
    %340 = vector.extract_strided_slice %327 {offsets = [0, 1], sizes = [4, 1], strides = [1, 1]} : vector<4x9xf32> to vector<4x1xf32>
    %341 = vector.extract_strided_slice %13 {offsets = [1, 0], sizes = [1, 256], strides = [1, 1]} : vector<9x256xf32> to vector<1x256xf32>
    %342 = vector.broadcast %340 : vector<4x1xf32> to vector<4x256xf32>
    %343 = vector.broadcast %341 : vector<1x256xf32> to vector<4x256xf32>
    %344 = arith.mulf %342, %343 : vector<4x256xf32>
    %345 = arith.mulf %344, %339 : vector<4x256xf32>
    %346 = arith.addf %338, %345 : vector<4x256xf32>
    %c15_i32_86 = arith.constant 15 : i32
    %347 = tpu.dynamic_rotate %326 by %c15_i32_86 dim 1 : vector<4x256xf32>, i32 -> vector<4x256xf32>
    %348 = vector.extract_strided_slice %327 {offsets = [0, 2], sizes = [4, 1], strides = [1, 1]} : vector<4x9xf32> to vector<4x1xf32>
    %349 = vector.extract_strided_slice %13 {offsets = [2, 0], sizes = [1, 256], strides = [1, 1]} : vector<9x256xf32> to vector<1x256xf32>
    %350 = vector.broadcast %348 : vector<4x1xf32> to vector<4x256xf32>
    %351 = vector.broadcast %349 : vector<1x256xf32> to vector<4x256xf32>
    %352 = arith.mulf %350, %351 : vector<4x256xf32>
    %353 = arith.mulf %352, %347 : vector<4x256xf32>
    %354 = arith.addf %346, %353 : vector<4x256xf32>
    %c1_i32_87 = arith.constant 1 : i32
    %355 = tpu.dynamic_rotate %326 by %c1_i32_87 dim 1 : vector<4x256xf32>, i32 -> vector<4x256xf32>
    %356 = vector.extract_strided_slice %327 {offsets = [0, 3], sizes = [4, 1], strides = [1, 1]} : vector<4x9xf32> to vector<4x1xf32>
    %357 = vector.extract_strided_slice %13 {offsets = [3, 0], sizes = [1, 256], strides = [1, 1]} : vector<9x256xf32> to vector<1x256xf32>
    %358 = vector.broadcast %356 : vector<4x1xf32> to vector<4x256xf32>
    %359 = vector.broadcast %357 : vector<1x256xf32> to vector<4x256xf32>
    %360 = arith.mulf %358, %359 : vector<4x256xf32>
    %361 = arith.mulf %360, %355 : vector<4x256xf32>
    %362 = arith.addf %354, %361 : vector<4x256xf32>
    %c255_i32_88 = arith.constant 255 : i32
    %363 = tpu.dynamic_rotate %326 by %c255_i32_88 dim 1 : vector<4x256xf32>, i32 -> vector<4x256xf32>
    %364 = vector.extract_strided_slice %327 {offsets = [0, 5], sizes = [4, 1], strides = [1, 1]} : vector<4x9xf32> to vector<4x1xf32>
    %365 = vector.extract_strided_slice %13 {offsets = [5, 0], sizes = [1, 256], strides = [1, 1]} : vector<9x256xf32> to vector<1x256xf32>
    %366 = vector.broadcast %364 : vector<4x1xf32> to vector<4x256xf32>
    %367 = vector.broadcast %365 : vector<1x256xf32> to vector<4x256xf32>
    %368 = arith.mulf %366, %367 : vector<4x256xf32>
    %369 = arith.mulf %368, %363 : vector<4x256xf32>
    %370 = arith.addf %362, %369 : vector<4x256xf32>
    %c241_i32_89 = arith.constant 241 : i32
    %371 = tpu.dynamic_rotate %326 by %c241_i32_89 dim 1 : vector<4x256xf32>, i32 -> vector<4x256xf32>
    %372 = vector.extract_strided_slice %327 {offsets = [0, 6], sizes = [4, 1], strides = [1, 1]} : vector<4x9xf32> to vector<4x1xf32>
    %373 = vector.extract_strided_slice %13 {offsets = [6, 0], sizes = [1, 256], strides = [1, 1]} : vector<9x256xf32> to vector<1x256xf32>
    %374 = vector.broadcast %372 : vector<4x1xf32> to vector<4x256xf32>
    %375 = vector.broadcast %373 : vector<1x256xf32> to vector<4x256xf32>
    %376 = arith.mulf %374, %375 : vector<4x256xf32>
    %377 = arith.mulf %376, %371 : vector<4x256xf32>
    %378 = arith.addf %370, %377 : vector<4x256xf32>
    %c240_i32_90 = arith.constant 240 : i32
    %379 = tpu.dynamic_rotate %326 by %c240_i32_90 dim 1 : vector<4x256xf32>, i32 -> vector<4x256xf32>
    %380 = vector.extract_strided_slice %327 {offsets = [0, 7], sizes = [4, 1], strides = [1, 1]} : vector<4x9xf32> to vector<4x1xf32>
    %381 = vector.extract_strided_slice %13 {offsets = [7, 0], sizes = [1, 256], strides = [1, 1]} : vector<9x256xf32> to vector<1x256xf32>
    %382 = vector.broadcast %380 : vector<4x1xf32> to vector<4x256xf32>
    %383 = vector.broadcast %381 : vector<1x256xf32> to vector<4x256xf32>
    %384 = arith.mulf %382, %383 : vector<4x256xf32>
    %385 = arith.mulf %384, %379 : vector<4x256xf32>
    %386 = arith.addf %378, %385 : vector<4x256xf32>
    %c239_i32_91 = arith.constant 239 : i32
    %387 = tpu.dynamic_rotate %326 by %c239_i32_91 dim 1 : vector<4x256xf32>, i32 -> vector<4x256xf32>
    %388 = vector.extract_strided_slice %327 {offsets = [0, 8], sizes = [4, 1], strides = [1, 1]} : vector<4x9xf32> to vector<4x1xf32>
    %389 = vector.extract_strided_slice %13 {offsets = [8, 0], sizes = [1, 256], strides = [1, 1]} : vector<9x256xf32> to vector<1x256xf32>
    %390 = vector.broadcast %388 : vector<4x1xf32> to vector<4x256xf32>
    %391 = vector.broadcast %389 : vector<1x256xf32> to vector<4x256xf32>
    %392 = arith.mulf %390, %391 : vector<4x256xf32>
    %393 = arith.mulf %392, %387 : vector<4x256xf32>
    %394 = arith.addf %386, %393 : vector<4x256xf32>
    %395 = vector.extract_strided_slice %12 {offsets = [12, 0], sizes = [4, 1], strides = [1, 1]} : vector<16x1xf32> to vector<4x1xf32>
    %396 = vector.broadcast %395 : vector<4x1xf32> to vector<4x256xf32>
    %397 = arith.addf %394, %396 : vector<4x256xf32>
    %cst_92 = arith.constant 0.000000e+00 : f32
    %cst_93 = arith.constant 4.000000e+00 : f32
    %398 = vector.broadcast %cst_92 : f32 to vector<4x256xf32>
    %399 = arith.maximumf %398, %397 : vector<4x256xf32>
    %400 = vector.broadcast %cst_93 : f32 to vector<4x256xf32>
    %401 = arith.minimumf %400, %399 : vector<4x256xf32>
    %cst_94 = arith.constant 6.375000e+01 : f32
    %402 = vector.broadcast %cst_94 : f32 to vector<4x256xf32>
    %403 = arith.mulf %401, %402 : vector<4x256xf32>
    %404 = math.roundeven %403 : vector<4x256xf32>
    %cst_95 = arith.constant 0.0156862754 : f32
    %405 = vector.broadcast %cst_95 : f32 to vector<4x256xf32>
    %406 = arith.mulf %404, %405 : vector<4x256xf32>
    %c0_96 = arith.constant 0 : index
    %c28 = arith.constant 28 : index
    %c0_97 = arith.constant 0 : index
    %407 = vector.load %arg7[%c0_96, %c28, %c0_97] : memref<1x32x256xf32, #tpu.memory_space<vmem>>, vector<1x4x256xf32>
    %408 = vector.shape_cast %407 : vector<1x4x256xf32> to vector<4x256xf32>
    %409 = vector.shape_cast %406 : vector<4x256xf32> to vector<1x4x256xf32>
    tpu.vector_store %arg7[%c0_96, %c28, %c0_97], %409 {strides = array<i32>} : memref<1x32x256xf32, #tpu.memory_space<vmem>>, vector<1x4x256xf32>,
    return
  }
  func.func @transform_0(%arg0: i32) -> (i32, i32, i32) {
    %c0_i32 = arith.constant 0 : i32
    %c0_i32_0 = arith.constant 0 : i32
    %c0_i32_1 = arith.constant 0 : i32
    return %arg0, %c0_i32, %c0_i32_0 : i32, i32, i32
  }
  func.func @transform_1(%arg0: i32) -> (i32, i32) {
    %c0_i32 = arith.constant 0 : i32
    %c0_i32_0 = arith.constant 0 : i32
    %c0_i32_1 = arith.constant 0 : i32
    return %c0_i32, %c0_i32_0 : i32, i32
  }
  func.func @transform_2(%arg0: i32) -> (i32, i32) {
    %c0_i32 = arith.constant 0 : i32
    %c0_i32_0 = arith.constant 0 : i32
    %c0_i32_1 = arith.constant 0 : i32
    return %c0_i32, %c0_i32_0 : i32, i32
  }
  func.func @transform_3(%arg0: i32) -> (i32, i32) {
    %c0_i32 = arith.constant 0 : i32
    %c0_i32_0 = arith.constant 0 : i32
    %c0_i32_1 = arith.constant 0 : i32
    return %c0_i32, %c0_i32_0 : i32, i32
  }
  func.func @transform_4(%arg0: i32) -> (i32, i32) {
    %c0_i32 = arith.constant 0 : i32
    %c0_i32_0 = arith.constant 0 : i32
    %c0_i32_1 = arith.constant 0 : i32
    return %c0_i32, %c0_i32_0 : i32, i32
  }
  func.func @transform_5(%arg0: i32) -> (i32, i32) {
    %c0_i32 = arith.constant 0 : i32
    %c0_i32_0 = arith.constant 0 : i32
    %c0_i32_1 = arith.constant 0 : i32
    return %c0_i32, %c0_i32_0 : i32, i32
  }
  func.func @transform_6(%arg0: i32) -> (i32, i32, i32) {
    %c0_i32 = arith.constant 0 : i32
    %c0_i32_0 = arith.constant 0 : i32
    %c0_i32_1 = arith.constant 0 : i32
    return %arg0, %c0_i32, %c0_i32_0 : i32, i32, i32
  }
}

</mosaic_0001>

<llo_original>
// kernel: dense_block_forward.1
$region0: #{dense_block_forward.1}
  #allocation0 [shape = 'u32[]', space=smem, size = 0x4, offset = 0x4, fixed_abs, tag = 'smem constant byte address 0x4 - core index']
  #allocation1 [shape = 'u32[144,128]{1,0:T(1,128)}', space=vmem, size = 0x12000, scoped, tag = 'internal scratch']
  %s0 = inlined_call_operand.vmem [shape: f32[2,16,256], index: 0, kind: input, shape index: {}]
  %s1 = inlined_call_operand.vmem [shape: f32[16,32], index: 1, kind: input, shape index: {}]
  %s2 = inlined_call_operand.vmem [shape: f32[16,1], index: 2, kind: input, shape index: {}]
  %s3 = inlined_call_operand.vmem [shape: f32[16,9], index: 3, kind: input, shape index: {}]
  %s4 = inlined_call_operand.vmem [shape: f32[16,1], index: 4, kind: input, shape index: {}]
  %s5 = inlined_call_operand.vmem [shape: f32[9,256], index: 5, kind: input, shape index: {}]
  %s6 = inlined_call_operand.vmem [shape: f32[2,32,256], index: 6, kind: output, shape index: {}]
  %s7 = sld [smem:[#allocation0]]
  $region57: #{dense_block_forward.1} parent=0
    _
  %s9 = ssub.s32 1, %s7
  %s10 = scalar_select 0, %s9, %s7
  loop: start=0, step=1, limit=4
  $region2: #{dense_block_forward.1} parent=0 // loop_pre_header
    _
  $region3: #{dense_block_forward.1} parent=0 // loop_header
    %s12 = sphi 0, %s16
    %p13 = scmp.ge.s32.totalorder %s12, 4
    %s22 = sphi 0, %s24
    %s25 = sphi 0, %s22
    %s26 = sphi 0, %s25
    %s42 = sphi 0, %s26
    %s46 = sphi 0, %s46
    %s48 = sphi 0, %s46
    %s49 = sphi 0, %s48
    %s63 = sphi 0, %s49
    %s67 = sphi 0, %s67
    %s69 = sphi 0, %s67
    %s70 = sphi 0, %s69
    %s84 = sphi 0, %s70
    %s88 = sphi 0, %s88
    %s90 = sphi 0, %s88
    %s91 = sphi 0, %s90
    %s105 = sphi 0, %s91
    %s109 = sphi 0, %s109
    %s111 = sphi 0, %s109
    %s112 = sphi 0, %s111
    %s126 = sphi 0, %s112
    %s130 = sphi 0, %s130
    %s132 = sphi 0, %s130
    %s133 = sphi 0, %s132
    %s147 = sphi 0, %s133
    %s153 = sphi 0, %s155
    %s156 = sphi 0, %s153
    %s157 = sphi 0, %s156
    %s173 = sphi 0, %s157
  $region4: #{dense_block_forward.1} parent=0 // loop_header_branch
    %15 = sbr.rel (%p13) target = $region8
  $region5: #{dense_block_forward.1} parent=0 // loop_body
    %s17 = ssub.s32 %s12, 1
    %s18 = ssub.s32 %s12, 2
    %s19 = sadd.s32 %s12, 1
    %s20 = ssub.s32 %s12, %s19
    %p21 = scmp.eq.s32.totalorder %s20, 0
    %s23 = sadd.s32 %s22, 1
    %s24 = scalar_select %p21, %s22, %s23
    %p27 = pneg %p21
    %p28 = scmp.eq.s32.totalorder %s12, 1
    %p29 = por %p27, %p28
    %p30 = scmp.ne.s32.totalorder %s22, %s25
    %p31 = scmp.eq.s32.totalorder %s12, 0
    %p32 = por %p30, %p31
    %p33 = scmp.ne.s32.totalorder %s22, %s25
    %p34 = scmp.eq.s32.totalorder %s17, 1
    %p35 = por %p33, %p34
    %p36 = scmp.ne.s32.totalorder %s25, %s26
    %p37 = scmp.eq.s32.totalorder %s17, 0
    %p38 = por %p36, %p37
    %p39 = scmp.ne.s32.totalorder %s25, %s26
    %p40 = scmp.eq.s32.totalorder %s18, 1
    %p41 = por %p39, %p40
    %p43 = scmp.ne.s32.totalorder %s26, %s42
    %p44 = scmp.eq.s32.totalorder %s18, 0
    %p45 = por %p43, %p44
    %s47 = sadd.s32 %s46, 1
    %p50 = scmp.eq.s32.totalorder %s12, 1
    %p51 = scmp.ne.s32.totalorder %s46, %s48
    %p52 = scmp.eq.s32.totalorder %s12, 0
    %p53 = por %p51, %p52
    %p54 = scmp.ne.s32.totalorder %s46, %s48
    %p55 = scmp.eq.s32.totalorder %s17, 1
    %p56 = por %p54, %p55
    %p57 = scmp.ne.s32.totalorder %s48, %s49
    %p58 = scmp.eq.s32.totalorder %s17, 0
    %p59 = por %p57, %p58
    %p60 = scmp.ne.s32.totalorder %s48, %s49
    %p61 = scmp.eq.s32.totalorder %s18, 1
    %p62 = por %p60, %p61
    %p64 = scmp.ne.s32.totalorder %s49, %s63
    %p65 = scmp.eq.s32.totalorder %s18, 0
    %p66 = por %p64, %p65
    %s68 = sadd.s32 %s67, 1
    %p71 = scmp.eq.s32.totalorder %s12, 1
    %p72 = scmp.ne.s32.totalorder %s67, %s69
    %p73 = scmp.eq.s32.totalorder %s12, 0
    %p74 = por %p72, %p73
    %p75 = scmp.ne.s32.totalorder %s67, %s69
    %p76 = scmp.eq.s32.totalorder %s17, 1
    %p77 = por %p75, %p76
    %p78 = scmp.ne.s32.totalorder %s69, %s70
    %p79 = scmp.eq.s32.totalorder %s17, 0
    %p80 = por %p78, %p79
    %p81 = scmp.ne.s32.totalorder %s69, %s70
    %p82 = scmp.eq.s32.totalorder %s18, 1
    %p83 = por %p81, %p82
    %p85 = scmp.ne.s32.totalorder %s70, %s84
    %p86 = scmp.eq.s32.totalorder %s18, 0
    %p87 = por %p85, %p86
    %s89 = sadd.s32 %s88, 1
    %p92 = scmp.eq.s32.totalorder %s12, 1
    %p93 = scmp.ne.s32.totalorder %s88, %s90
    %p94 = scmp.eq.s32.totalorder %s12, 0
    %p95 = por %p93, %p94
    %p96 = scmp.ne.s32.totalorder %s88, %s90
    %p97 = scmp.eq.s32.totalorder %s17, 1
    %p98 = por %p96, %p97
    %p99 = scmp.ne.s32.totalorder %s90, %s91
    %p100 = scmp.eq.s32.totalorder %s17, 0
    %p101 = por %p99, %p100
    %p102 = scmp.ne.s32.totalorder %s90, %s91
    %p103 = scmp.eq.s32.totalorder %s18, 1
    %p104 = por %p102, %p103
    %p106 = scmp.ne.s32.totalorder %s91, %s105
    %p107 = scmp.eq.s32.totalorder %s18, 0
    %p108 = por %p106, %p107
    %s110 = sadd.s32 %s109, 1
    %p113 = scmp.eq.s32.totalorder %s12, 1
    %p114 = scmp.ne.s32.totalorder %s109, %s111
    %p115 = scmp.eq.s32.totalorder %s12, 0
    %p116 = por %p114, %p115
    %p117 = scmp.ne.s32.totalorder %s109, %s111
    %p118 = scmp.eq.s32.totalorder %s17, 1
    %p119 = por %p117, %p118
    %p120 = scmp.ne.s32.totalorder %s111, %s112
    %p121 = scmp.eq.s32.totalorder %s17, 0
    %p122 = por %p120, %p121
    %p123 = scmp.ne.s32.totalorder %s111, %s112
    %p124 = scmp.eq.s32.totalorder %s18, 1
    %p125 = por %p123, %p124
    %p127 = scmp.ne.s32.totalorder %s112, %s126
    %p128 = scmp.eq.s32.totalorder %s18, 0
    %p129 = por %p127, %p128
    %s131 = sadd.s32 %s130, 1
    %p134 = scmp.eq.s32.totalorder %s12, 1
    %p135 = scmp.ne.s32.totalorder %s130, %s132
    %p136 = scmp.eq.s32.totalorder %s12, 0
    %p137 = por %p135, %p136
    %p138 = scmp.ne.s32.totalorder %s130, %s132
    %p139 = scmp.eq.s32.totalorder %s17, 1
    %p140 = por %p138, %p139
    %p141 = scmp.ne.s32.totalorder %s132, %s133
    %p142 = scmp.eq.s32.totalorder %s17, 0
    %p143 = por %p141, %p142
    %p144 = scmp.ne.s32.totalorder %s132, %s133
    %p145 = scmp.eq.s32.totalorder %s18, 1
    %p146 = por %p144, %p145
    %p148 = scmp.ne.s32.totalorder %s133, %s147
    %p149 = scmp.eq.s32.totalorder %s18, 0
    %p150 = por %p148, %p149
    %s151 = ssub.s32 %s12, %s19
    %p152 = scmp.eq.s32.totalorder %s151, 0
    %s154 = sadd.s32 %s153, 1
    %s155 = scalar_select %p152, %s153, %s154
    %p158 = pneg %p152
    %p159 = scmp.eq.s32.totalorder %s12, 1
    %p160 = por %p158, %p159
    %p161 = scmp.ne.s32.totalorder %s153, %s156
    %p162 = scmp.eq.s32.totalorder %s12, 0
    %p163 = por %p161, %p162
    %p164 = scmp.ne.s32.totalorder %s153, %s156
    %p165 = scmp.eq.s32.totalorder %s17, 1
    %p166 = por %p164, %p165
    %p167 = scmp.ne.s32.totalorder %s156, %s157
    %p168 = scmp.eq.s32.totalorder %s17, 0
    %p169 = por %p167, %p168
    %p170 = scmp.ne.s32.totalorder %s156, %s157
    %p171 = scmp.eq.s32.totalorder %s18, 1
    %p172 = por %p170, %p171
    %p174 = scmp.ne.s32.totalorder %s157, %s173
    %p175 = scmp.eq.s32.totalorder %s18, 0
    %p176 = por %p174, %p175
    %p177 = scmp.le.s32.totalorder 1, %s12
    %p178 = scmp.lt.s32.totalorder %s12, 3
    %p179 = pnand %p177, %p178
    %p180 = pneg %p179
    // Predicated region
    $region9: #{dense_block_forward.1} parent=5 // pred_check
      _
    $region10: #{dense_block_forward.1} parent=5 // pred_check_branch
      %182 = sbr.rel (%p179) target = $region12
    $region11: #{dense_block_forward.1} parent=5 // pred_region
      %s183 = ssub.s32 %s12, 1
      // Predicated region
      $region13: #{dense_block_forward.1} parent=11 // pred_check
        %p184 = pneg %p59
      $region14: #{dense_block_forward.1} parent=11 // pred_check_branch
        %186 = sbr.rel (%p184) target = $region16
      $region15: #{dense_block_forward.1} parent=11 // pred_region
        _
      $region16: #{dense_block_forward.1} parent=11 // pred_fallthru
        _
      // Predicated region
      $region17: #{dense_block_forward.1} parent=11 // pred_check
        %p187 = pneg %p80
      $region18: #{dense_block_forward.1} parent=11 // pred_check_branch
        %189 = sbr.rel (%p187) target = $region20
      $region19: #{dense_block_forward.1} parent=11 // pred_region
        _
      $region20: #{dense_block_forward.1} parent=11 // pred_fallthru
        _
      // Predicated region
      $region21: #{dense_block_forward.1} parent=11 // pred_check
        %p190 = pneg %p101
      $region22: #{dense_block_forward.1} parent=11 // pred_check_branch
        %192 = sbr.rel (%p190) target = $region24
      $region23: #{dense_block_forward.1} parent=11 // pred_region
        _
      $region24: #{dense_block_forward.1} parent=11 // pred_fallthru
        _
      // Predicated region
      $region25: #{dense_block_forward.1} parent=11 // pred_check
        %p193 = pneg %p122
      $region26: #{dense_block_forward.1} parent=11 // pred_check_branch
        %195 = sbr.rel (%p193) target = $region28
      $region27: #{dense_block_forward.1} parent=11 // pred_region
        _
      $region28: #{dense_block_forward.1} parent=11 // pred_fallthru
        _
      // Predicated region
      $region29: #{dense_block_forward.1} parent=11 // pred_check
        %p196 = pneg %p143
      $region30: #{dense_block_forward.1} parent=11 // pred_check_branch
        %198 = sbr.rel (%p196) target = $region32
      $region31: #{dense_block_forward.1} parent=11 // pred_region
        _
      $region32: #{dense_block_forward.1} parent=11 // pred_fallthru
        _
    $region12: #{dense_block_forward.1} parent=5 // pred_fallthru
      _
    %p199 = scmp.lt.s32.totalorder %s12, 2
    // Predicated region
    $region33: #{dense_block_forward.1} parent=5 // pred_check
      %p200 = pneg %p199
    $region34: #{dense_block_forward.1} parent=5 // pred_check_branch
      %202 = sbr.rel (%p200) target = $region36
    $region35: #{dense_block_forward.1} parent=5 // pred_region
      // Predicated region
      $region37: #{dense_block_forward.1} parent=35 // pred_check
        %p203 = pneg %p32
      $region38: #{dense_block_forward.1} parent=35 // pred_check_branch
        %205 = sbr.rel (%p203) target = $region40
      $region39: #{dense_block_forward.1} parent=35 // pred_region
        %p206 = scmp.lt.s32.totalorder %s12, 1
        %s207 = scalar_select %p206, %s12, 1
        %s208 = smul.addr %s207, 4
        %s209 = smul.addr %s208, 8
        %s210 = scalar_lea.vmem %s0, %s209
      $region40: #{dense_block_forward.1} parent=35 // pred_fallthru
        _
    $region36: #{dense_block_forward.1} parent=5 // pred_fallthru
      _
    %p211 = scmp.le.s32.totalorder 1, %s12
    %p212 = scmp.lt.s32.totalorder %s12, 3
    %p213 = pnand %p211, %p212
    %p214 = pneg %p213
    // Predicated region
    $region41: #{dense_block_forward.1} parent=5 // pred_check
      _
    $region42: #{dense_block_forward.1} parent=5 // pred_check_branch
      %216 = sbr.rel (%p213) target = $region44
    $region43: #{dense_block_forward.1} parent=5 // pred_region
      %s217 = ssub.s32 %s12, 1
      %p218 = scmp.lt.s32.totalorder %s17, 1
      %s219 = scalar_select %p218, %s17, 1
      %s220 = smul.addr %s219, 4
      %s221 = smul.addr %s220, 8
      %s222 = scalar_lea.vmem %s0, %s221
      %p223 = pneg %p38
      %p224 = pneg %p35
      %p225 = pneg %p59
      %p226 = pneg %p56
      %p227 = pneg %p80
      %p228 = pneg %p77
      %p229 = pneg %p101
      %p230 = pneg %p98
      %p231 = pneg %p122
      %p232 = pneg %p119
      %p233 = pneg %p143
      %p234 = pneg %p140
      %p235 = pneg %p169
      %p236 = pneg %p166
      %p237 = scmp.lt.s32.totalorder %s17, 1
      %s238 = scalar_select %p237, %s17, 1
      %s239 = smul.addr %s238, 8
      %s240 = smul.addr %s239, 8
      %s241 = scalar_lea.vmem %s6, %s240
      %p242 = scmp.lt.s32.totalorder %s17, 1
      %s243 = scalar_select %p242, %s17, 1
      %s244 = smul.addr %s243, 4
      %s245 = smul.addr %s244, 8
      %s246 = scalar_lea.vmem %s0, %s245
      %p247 = scmp.lt.s32.totalorder %s17, 1
      %s248 = scalar_select %p247, %s17, 1
      %s249 = smul.addr %s248, 8
      %s250 = smul.addr %s249, 8
      %s251 = scalar_lea.vmem %s6, %s250
      %v252 = vld [vmem:[%s246] sm:$0xff]
      %v253 = vld [vmem:[%s246 + $0x8] sm:$0xff]
      %v254 = vld [vmem:[%s246 + $0x10] sm:$0xff]
      %v255 = vld [vmem:[%s246 + $0x18] sm:$0xff]
      %256 = vst [vmem:[%s251] sm:$0xff] %v252
      %257 = vst [vmem:[%s251 + $0x8] sm:$0xff] %v253
      %258 = vst [vmem:[%s251 + $0x10] sm:$0xff] %v254
      %259 = vst [vmem:[%s251 + $0x18] sm:$0xff] %v255
      %260 = vst [vmem:[%s251 + $0x20] sm:$0xff] 0.0
      %261 = vst [vmem:[%s251 + $0x28] sm:$0xff] 0.0
      %262 = vst [vmem:[%s251 + $0x30] sm:$0xff] 0.0
      %263 = vst [vmem:[%s251 + $0x38] sm:$0xff] 0.0
      %v264 = vld [vmem:[%s1] sm:$0xff]
      %v265 = vld [vmem:[%s1 + $0x8] sm:$0xff]
      %v266 = vld [vmem:[%s2] sm:$0xff]
      %v267 = vld [vmem:[%s2 + $0x8] sm:$0xff]
      %v268 = vld [vmem:[%s3] sm:$0xff]
      %v269 = vld [vmem:[%s3 + $0x8] sm:$0xff]
      %v270 = vld [vmem:[%s4] sm:$0xff]
      %v271 = vld [vmem:[%s4 + $0x8] sm:$0xff]
      %v272 = vld [vmem:[%s5] sm:$0xff]
      %v273 = vld [vmem:[%s5 + $0x8] sm:$0xff]
      %v274 = vld [vmem:[%s5 + $0x10] sm:$0x1]
      %v275 = vld [vmem:[%s5 + $0x18] sm:$0x1]
      %v276 = vld [vmem:[%s251] sm:$0xff]
      %v277 = vld [vmem:[%s251 + $0x8] sm:$0xff]
      %v278 = vld [vmem:[%s251 + $0x10] sm:$0xff]
      %v279 = vld [vmem:[%s251 + $0x18] sm:$0xff]
      %v280 = vld [vmem:[%s251 + $0x20] sm:$0xff]
      %v281 = vld [vmem:[%s251 + $0x28] sm:$0xff]
      %v282 = vld [vmem:[%s251 + $0x30] sm:$0xff]
      %v283 = vld [vmem:[%s251 + $0x38] sm:$0xff]
      %285 = vset.pattern.permute.xlu0 0
      %286 = vperm.xlu0 %285, %v266
      %v287 = vpop.permute.xlu0 %286
      %vm289 = vcmask 261120
      %v291 = vsel %vm289, %v264, 0
      %293 = vmatprep.subr.mxu0 %v277
      %294 = vmatpush1.msra.mxu0 %v276
      %295 = vmatprep.subr.mxu0 %v279
      %296 = vmatpush1.msra.mxu0 %v278
      %297 = vmatprep.subr.mxu0 %v281
      %298 = vmatpush1.msra.mxu0 %v280
      %299 = vmatprep.subr.mxu0 %v283
      %300 = vmatpush1.msra.mxu0 %v282
      %301 = vmatprep.subr.mxu0 0.0
      %302 = vmatpush1.msra.mxu0 0.0
      %303 = vmatprep.subr.mxu0 0.0
      %304 = vmatpush1.msra.mxu0 0.0
      %305 = vmatprep.subr.mxu0 0.0
      %306 = vmatpush1.msra.mxu0 0.0
      %307 = vmatprep.subr.mxu0 0.0
      %308 = vmatpush1.msra.mxu0 0.0
      %309 = vmatprep.subr.mxu0 0.0
      %310 = vmatpush1.msra.mxu0 0.0
      %311 = vmatprep.subr.mxu0 0.0
      %312 = vmatpush1.msra.mxu0 0.0
      %313 = vmatprep.subr.mxu0 0.0
      %314 = vmatpush1.msra.mxu0 0.0
      %315 = vmatprep.subr.mxu0 0.0
      %316 = vmatpush1.msra.mxu0 0.0
      %317 = vmatprep.subr.mxu0 0.0
      %318 = vmatpush1.msra.mxu0 0.0
      %319 = vmatprep.subr.mxu0 0.0
      %320 = vmatpush1.msra.mxu0 0.0
      %321 = vmatprep.subr.mxu0 0.0
      %322 = vmatpush1.msra.mxu0 0.0
      %323 = vmatprep.subr.mxu0 0.0
      %324 = vmatpush1.msra.mxu0 0.0
      %325 = vmatprep.subr.mxu0 0.0
      %326 = vmatpush1.msra.mxu0 0.0
      %327 = vmatprep.subr.mxu0 0.0
      %328 = vmatpush1.msra.mxu0 0.0
      %329 = vmatprep.subr.mxu0 0.0
      %330 = vmatpush1.msra.mxu0 0.0
      %331 = vmatprep.subr.mxu0 0.0
      %332 = vmatpush1.msra.mxu0 0.0
      %333 = vmatprep.subr.mxu0 0.0
      %334 = vmatpush1.msra.mxu0 0.0
      %335 = vmatprep.subr.mxu0 0.0
      %336 = vmatpush1.msra.mxu0 0.0
      %337 = vmatprep.subr.mxu0 0.0
      %338 = vmatpush1.msra.mxu0 0.0
      %339 = vmatprep.subr.mxu0 0.0
      %340 = vmatpush1.msra.mxu0 0.0
      %341 = vmatprep.subr.mxu0 0.0
      %342 = vmatpush1.msra.mxu0 0.0
      %343 = vmatprep.subr.mxu0 0.0
      %344 = vmatpush1.msra.mxu0 0.0
      %345 = vmatprep.subr.mxu0 0.0
      %346 = vmatpush1.msra.mxu0 0.0
      %347 = vmatprep.subr.mxu0 0.0
      %348 = vmatpush1.msra.mxu0 0.0
      %349 = vmatprep.subr.mxu0 0.0
      %350 = vmatpush1.msra.mxu0 0.0
      %351 = vmatprep.subr.mxu0 0.0
      %352 = vmatpush1.msra.mxu0 0.0
      %353 = vmatprep.subr.mxu0 0.0
      %354 = vmatpush1.msra.mxu0 0.0
      %355 = vmatprep.subr.mxu0 0.0
      %356 = vmatpush1.msra.mxu0 0.0
      %357 = vmatprep.mubr.f32.mxu0 0.0
      %358 = vmatmul.mubr.f32.gmra.mrb[0].mxu0 %v291
      %v359 = vpop.f32.mrb[0].mxu0
      %v360 = vadd.f32 %v287, %v359
      %v361 = vpop.f32.mrb[0].mxu0
      %v362 = vadd.f32 %v287, %v361
      %363 = vdwg.mxu0
      %v364 = vmax.f32 %v360, 0.0
      %v365 = vmax.f32 %v362, 0.0
      %v366 = vmin.f32 %v364, 4.0
      %v367 = vmin.f32 %v365, 4.0
      %v368 = vmul.f32 %v366, 63.75
      %v369 = vmul.f32 %v367, 63.75
      %v370 = vround.ne.pseudo %v368
      %v371 = vround.ne.pseudo %v369
      %v372 = vmul.f32 %v370, 0.015686275
      %v373 = vmul.f32 %v371, 0.015686275
      %375 = vset.pattern.permute.xlu0 4
      %376 = vperm.xlu0 %375, %v268
      %v377 = vpop.permute.xlu0 %376
      %v379 = vmul.f32 %v377, %v372
      %v380 = vmul.f32 %v377, %v373
      %381 = vrot.lane.b32.xlu0 %v372, 17
      %v382 = vpop.permute.xlu0 %381
      %383 = vrot.lane.b32.xlu0 %v373, 17
      %v384 = vpop.permute.xlu0 %383
      %v385 = vlaneseq
      %v386 = vand.u32 %v385, 127
      %vm387 = vcmp.lt.s32.totalorder %v386, 17
      %v388 = vsel %vm387, %v382, %v384
      %v389 = vsel %vm387, %v384, %v382
      %390 = vset.pattern.permute.xlu0 0
      %391 = vperm.xlu0 %390, %v268
      %v392 = vpop.permute.xlu0 %391
      %v394 = vlaneseq
      %v395 = vshrl.u32 %v394, 7
      %v396 = vsub.s32 0, %v395
      %v397 = vrot.slane %v272, %v396
      %v398 = vlaneseq
      %v399 = vshrl.u32 %v398, 7
      %v400 = vsub.s32 0, %v399
      %v401 = vrot.slane %v273, %v400
      %v402 = vmul.f32 %v392, %v397
      %v403 = vmul.f32 %v392, %v401
      %v404 = vmul.f32 %v402, %v389
      %v405 = vmul.f32 %v403, %v388
      %v406 = vadd.f32 %v379, %v404
      %v407 = vadd.f32 %v380, %v405
      %408 = vrot.lane.b32.xlu0 %v372, 16
      %v409 = vpop.permute.xlu0 %408
      %410 = vrot.lane.b32.xlu0 %v373, 16
      %v411 = vpop.permute.xlu0 %410
      %vm412 = vcmp.lt.s32.totalorder %v386, 16
      %v413 = vsel %vm412, %v409, %v411
      %v414 = vsel %vm412, %v411, %v409
      %415 = vset.pattern.permute.xlu0 1
      %416 = vperm.xlu0 %415, %v268
      %v417 = vpop.permute.xlu0 %416
      %v419 = vlaneseq
      %v420 = vshrl.u32 %v419, 7
      %v421 = vsub.s32 1, %v420
      %v422 = vrot.slane %v272, %v421
      %v423 = vlaneseq
      %v424 = vshrl.u32 %v423, 7
      %v425 = vsub.s32 1, %v424
      %v426 = vrot.slane %v273, %v425
      %v427 = vmul.f32 %v417, %v422
      %v428 = vmul.f32 %v417, %v426
      %v429 = vmul.f32 %v427, %v414
      %v430 = vmul.f32 %v428, %v413
      %v431 = vadd.f32 %v406, %v429
      %v432 = vadd.f32 %v407, %v430
      %433 = vrot.lane.b32.xlu0 %v372, 15
      %v434 = vpop.permute.xlu0 %433
      %435 = vrot.lane.b32.xlu0 %v373, 15
      %v436 = vpop.permute.xlu0 %435
      %vm437 = vcmp.lt.s32.totalorder %v386, 15
      %v438 = vsel %vm437, %v434, %v436
      %v439 = vsel %vm437, %v436, %v434
      %440 = vset.pattern.permute.xlu0 2
      %441 = vperm.xlu0 %440, %v268
      %v442 = vpop.permute.xlu0 %441
      %v444 = vlaneseq
      %v445 = vshrl.u32 %v444, 7
      %v446 = vsub.s32 2, %v445
      %v447 = vrot.slane %v272, %v446
      %v448 = vlaneseq
      %v449 = vshrl.u32 %v448, 7
      %v450 = vsub.s32 2, %v449
      %v451 = vrot.slane %v273, %v450
      %v452 = vmul.f32 %v442, %v447
      %v453 = vmul.f32 %v442, %v451
      %v454 = vmul.f32 %v452, %v439
      %v455 = vmul.f32 %v453, %v438
      %v456 = vadd.f32 %v431, %v454
      %v457 = vadd.f32 %v432, %v455
      %458 = vrot.lane.b32.xlu0 %v372, 1
      %v459 = vpop.permute.xlu0 %458
      %460 = vrot.lane.b32.xlu0 %v373, 1
      %v461 = vpop.permute.xlu0 %460
      %vm462 = vcmp.lt.s32.totalorder %v386, 1
      %v463 = vsel %vm462, %v459, %v461
      %v464 = vsel %vm462, %v461, %v459
      %465 = vset.pattern.permute.xlu0 3
      %466 = vperm.xlu0 %465, %v268
      %v467 = vpop.permute.xlu0 %466
      %v469 = vlaneseq
      %v470 = vshrl.u32 %v469, 7
      %v471 = vsub.s32 3, %v470
      %v472 = vrot.slane %v272, %v471
      %v473 = vlaneseq
      %v474 = vshrl.u32 %v473, 7
      %v475 = vsub.s32 3, %v474
      %v476 = vrot.slane %v273, %v475
      %v477 = vmul.f32 %v467, %v472
      %v478 = vmul.f32 %v467, %v476
      %v479 = vmul.f32 %v477, %v464
      %v480 = vmul.f32 %v478, %v463
      %v481 = vadd.f32 %v456, %v479
      %v482 = vadd.f32 %v457, %v480
      %483 = vrot.lane.b32.xlu0 %v372, 127
      %v484 = vpop.permute.xlu0 %483
      %485 = vrot.lane.b32.xlu0 %v373, 127
      %v486 = vpop.permute.xlu0 %485
      %vm487 = vcmp.lt.s32.totalorder %v386, 127
      %v488 = vsel %vm487, %v484, %v486
      %v489 = vsel %vm487, %v486, %v484
      %490 = vset.pattern.permute.xlu0 5
      %491 = vperm.xlu0 %490, %v268
      %v492 = vpop.permute.xlu0 %491
      %v494 = vlaneseq
      %v495 = vshrl.u32 %v494, 7
      %v496 = vsub.s32 5, %v495
      %v497 = vrot.slane %v272, %v496
      %v498 = vlaneseq
      %v499 = vshrl.u32 %v498, 7
      %v500 = vsub.s32 5, %v499
      %v501 = vrot.slane %v273, %v500
      %v502 = vmul.f32 %v492, %v497
      %v503 = vmul.f32 %v492, %v501
      %v504 = vmul.f32 %v502, %v488
      %v505 = vmul.f32 %v503, %v489
      %v506 = vadd.f32 %v481, %v504
      %v507 = vadd.f32 %v482, %v505
      %508 = vrot.lane.b32.xlu0 %v372, 113
      %v509 = vpop.permute.xlu0 %508
      %510 = vrot.lane.b32.xlu0 %v373, 113
      %v511 = vpop.permute.xlu0 %510
      %vm512 = vcmp.lt.s32.totalorder %v386, 113
      %v513 = vsel %vm512, %v509, %v511
      %v514 = vsel %vm512, %v511, %v509
      %515 = vset.pattern.permute.xlu0 6
      %516 = vperm.xlu0 %515, %v268
      %v517 = vpop.permute.xlu0 %516
      %v519 = vlaneseq
      %v520 = vshrl.u32 %v519, 7
      %v521 = vsub.s32 6, %v520
      %v522 = vrot.slane %v272, %v521
      %v523 = vlaneseq
      %v524 = vshrl.u32 %v523, 7
      %v525 = vsub.s32 6, %v524
      %v526 = vrot.slane %v273, %v525
      %v527 = vmul.f32 %v517, %v522
      %v528 = vmul.f32 %v517, %v526
      %v529 = vmul.f32 %v527, %v513
      %v530 = vmul.f32 %v528, %v514
      %v531 = vadd.f32 %v506, %v529
      %v532 = vadd.f32 %v507, %v530
      %533 = vrot.lane.b32.xlu0 %v372, 112
      %v534 = vpop.permute.xlu0 %533
      %535 = vrot.lane.b32.xlu0 %v373, 112
      %v536 = vpop.permute.xlu0 %535
      %vm537 = vcmp.lt.s32.totalorder %v386, 112
      %v538 = vsel %vm537, %v534, %v536
      %v539 = vsel %vm537, %v536, %v534
      %540 = vset.pattern.permute.xlu0 7
      %541 = vperm.xlu0 %540, %v268
      %v542 = vpop.permute.xlu0 %541
      %v544 = vlaneseq
      %v545 = vshrl.u32 %v544, 7
      %v546 = vsub.s32 7, %v545
      %v547 = vrot.slane %v272, %v546
      %v548 = vlaneseq
      %v549 = vshrl.u32 %v548, 7
      %v550 = vsub.s32 7, %v549
      %v551 = vrot.slane %v273, %v550
      %v552 = vmul.f32 %v542, %v547
      %v553 = vmul.f32 %v542, %v551
      %v554 = vmul.f32 %v552, %v538
      %v555 = vmul.f32 %v553, %v539
      %v556 = vadd.f32 %v531, %v554
      %v557 = vadd.f32 %v532, %v555
      %558 = vrot.lane.b32.xlu0 %v372, 111
      %v559 = vpop.permute.xlu0 %558
      %560 = vrot.lane.b32.xlu0 %v373, 111
      %v561 = vpop.permute.xlu0 %560
      %vm562 = vcmp.lt.s32.totalorder %v386, 111
      %v563 = vsel %vm562, %v559, %v561
      %v564 = vsel %vm562, %v561, %v559
      %565 = vset.pattern.permute.xlu0 8
      %566 = vperm.xlu0 %565, %v268
      %v567 = vpop.permute.xlu0 %566
      %v569 = vlaneseq
      %v570 = vshrl.u32 %v569, 7
      %v571 = vsub.s32 0, %v570
      %v572 = vrot.slane %v274, %v571
      %v573 = vlaneseq
      %v574 = vshrl.u32 %v573, 7
      %v575 = vsub.s32 0, %v574
      %v576 = vrot.slane %v275, %v575
      %v577 = vmul.f32 %v567, %v572
      %v578 = vmul.f32 %v567, %v576
      %v579 = vmul.f32 %v577, %v563
      %v580 = vmul.f32 %v578, %v564
      %v581 = vadd.f32 %v556, %v579
      %v582 = vadd.f32 %v557, %v580
      %584 = vset.pattern.permute.xlu0 0
      %585 = vperm.xlu0 %584, %v270
      %v586 = vpop.permute.xlu0 %585
      %v588 = vadd.f32 %v581, %v586
      %v589 = vadd.f32 %v582, %v586
      %v590 = vmax.f32 %v588, 0.0
      %v591 = vmax.f32 %v589, 0.0
      %v592 = vmin.f32 %v590, 4.0
      %v593 = vmin.f32 %v591, 4.0
      %v594 = vmul.f32 %v592, 63.75
      %v595 = vmul.f32 %v593, 63.75
      %v596 = vround.ne.pseudo %v594
      %v597 = vround.ne.pseudo %v595
      %v598 = vmul.f32 %v596, 0.015686275
      %v599 = vmul.f32 %v597, 0.015686275
      %600 = vst [vmem:[%s251 + $0x20] sm:$0xf] %v598
      %601 = vst [vmem:[%s251 + $0x28] sm:$0xf] %v599
      %v602 = vld [vmem:[%s251] sm:$0xff]
      %v603 = vld [vmem:[%s251 + $0x8] sm:$0xff]
      %v604 = vld [vmem:[%s251 + $0x10] sm:$0xff]
      %v605 = vld [vmem:[%s251 + $0x18] sm:$0xff]
      %v606 = vld [vmem:[%s251 + $0x20] sm:$0xff]
      %v607 = vld [vmem:[%s251 + $0x28] sm:$0xff]
      %v608 = vld [vmem:[%s251 + $0x30] sm:$0xff]
      %v609 = vld [vmem:[%s251 + $0x38] sm:$0xff]
      %v610 = vrot.slane %v264, 4
      %v611 = vrot.slane %v287, 4
      %v613 = vsel %vm289, %v610, 0
      %615 = vmatprep.subr.mxu0 %v603
      %616 = vmatpush1.msra.mxu0 %v602
      %617 = vmatprep.subr.mxu0 %v605
      %618 = vmatpush1.msra.mxu0 %v604
      %619 = vmatprep.subr.mxu0 %v607
      %620 = vmatpush1.msra.mxu0 %v606
      %621 = vmatprep.subr.mxu0 %v609
      %622 = vmatpush1.msra.mxu0 %v608
      %623 = vmatprep.subr.mxu0 0.0
      %624 = vmatpush1.msra.mxu0 0.0
      %625 = vmatprep.subr.mxu0 0.0
      %626 = vmatpush1.msra.mxu0 0.0
      %627 = vmatprep.subr.mxu0 0.0
      %628 = vmatpush1.msra.mxu0 0.0
      %629 = vmatprep.subr.mxu0 0.0
      %630 = vmatpush1.msra.mxu0 0.0
      %631 = vmatprep.subr.mxu0 0.0
      %632 = vmatpush1.msra.mxu0 0.0
      %633 = vmatprep.subr.mxu0 0.0
      %634 = vmatpush1.msra.mxu0 0.0
      %635 = vmatprep.subr.mxu0 0.0
      %636 = vmatpush1.msra.mxu0 0.0
      %637 = vmatprep.subr.mxu0 0.0
      %638 = vmatpush1.msra.mxu0 0.0
      %639 = vmatprep.subr.mxu0 0.0
      %640 = vmatpush1.msra.mxu0 0.0
      %641 = vmatprep.subr.mxu0 0.0
      %642 = vmatpush1.msra.mxu0 0.0
      %643 = vmatprep.subr.mxu0 0.0
      %644 = vmatpush1.msra.mxu0 0.0
      %645 = vmatprep.subr.mxu0 0.0
      %646 = vmatpush1.msra.mxu0 0.0
      %647 = vmatprep.subr.mxu0 0.0
      %648 = vmatpush1.msra.mxu0 0.0
      %649 = vmatprep.subr.mxu0 0.0
      %650 = vmatpush1.msra.mxu0 0.0
      %651 = vmatprep.subr.mxu0 0.0
      %652 = vmatpush1.msra.mxu0 0.0
      %653 = vmatprep.subr.mxu0 0.0
      %654 = vmatpush1.msra.mxu0 0.0
      %655 = vmatprep.subr.mxu0 0.0
      %656 = vmatpush1.msra.mxu0 0.0
      %657 = vmatprep.subr.mxu0 0.0
      %658 = vmatpush1.msra.mxu0 0.0
      %659 = vmatprep.subr.mxu0 0.0
      %660 = vmatpush1.msra.mxu0 0.0
      %661 = vmatprep.subr.mxu0 0.0
      %662 = vmatpush1.msra.mxu0 0.0
      %663 = vmatprep.subr.mxu0 0.0
      %664 = vmatpush1.msra.mxu0 0.0
      %665 = vmatprep.subr.mxu0 0.0
      %666 = vmatpush1.msra.mxu0 0.0
      %667 = vmatprep.subr.mxu0 0.0
      %668 = vmatpush1.msra.mxu0 0.0
      %669 = vmatprep.subr.mxu0 0.0
      %670 = vmatpush1.msra.mxu0 0.0
      %671 = vmatprep.subr.mxu0 0.0
      %672 = vmatpush1.msra.mxu0 0.0
      %673 = vmatprep.subr.mxu0 0.0
      %674 = vmatpush1.msra.mxu0 0.0
      %675 = vmatprep.subr.mxu0 0.0
      %676 = vmatpush1.msra.mxu0 0.0
      %677 = vmatprep.subr.mxu0 0.0
      %678 = vmatpush1.msra.mxu0 0.0
      %679 = vmatprep.mubr.f32.mxu0 0.0
      %680 = vmatmul.mubr.f32.gmra.mrb[0].mxu0 %v613
      %v681 = vpop.f32.mrb[0].mxu0
      %v682 = vadd.f32 %v611, %v681
      %v683 = vpop.f32.mrb[0].mxu0
      %v684 = vadd.f32 %v611, %v683
      %685 = vdwg.mxu0
      %v686 = vmax.f32 %v682, 0.0
      %v687 = vmax.f32 %v684, 0.0
      %v688 = vmin.f32 %v686, 4.0
      %v689 = vmin.f32 %v687, 4.0
      %v690 = vmul.f32 %v688, 63.75
      %v691 = vmul.f32 %v689, 63.75
      %v692 = vround.ne.pseudo %v690
      %v693 = vround.ne.pseudo %v691
      %v694 = vmul.f32 %v692, 0.015686275
      %v695 = vmul.f32 %v693, 0.015686275
      %v698 = vrot.slane %v694, 4
      %v699 = vrot.slane %v695, 4
      %v702 = vmul.f32 %v377, %v698
      %v703 = vmul.f32 %v377, %v699
      %704 = vrot.lane.b32.xlu0 %v694, 17
      %v705 = vpop.permute.xlu0 %704
      %706 = vrot.lane.b32.xlu0 %v695, 17
      %v707 = vpop.permute.xlu0 %706
      %v708 = vsel %vm387, %v705, %v707
      %v709 = vsel %vm387, %v707, %v705
      %v712 = vrot.slane %v709, 4
      %v713 = vrot.slane %v708, 4
      %v716 = vmul.f32 %v402, %v712
      %v717 = vmul.f32 %v403, %v713
      %v718 = vadd.f32 %v702, %v716
      %v719 = vadd.f32 %v703, %v717
      %720 = vrot.lane.b32.xlu0 %v694, 16
      %v721 = vpop.permute.xlu0 %720
      %722 = vrot.lane.b32.xlu0 %v695, 16
      %v723 = vpop.permute.xlu0 %722
      %v724 = vsel %vm412, %v721, %v723
      %v725 = vsel %vm412, %v723, %v721
      %v728 = vrot.slane %v725, 4
      %v729 = vrot.slane %v724, 4
      %v732 = vmul.f32 %v427, %v728
      %v733 = vmul.f32 %v428, %v729
      %v734 = vadd.f32 %v718, %v732
      %v735 = vadd.f32 %v719, %v733
      %736 = vrot.lane.b32.xlu0 %v694, 15
      %v737 = vpop.permute.xlu0 %736
      %738 = vrot.lane.b32.xlu0 %v695, 15
      %v739 = vpop.permute.xlu0 %738
      %v740 = vsel %vm437, %v737, %v739
      %v741 = vsel %vm437, %v739, %v737
      %v744 = vrot.slane %v741, 4
      %v745 = vrot.slane %v740, 4
      %v748 = vmul.f32 %v452, %v744
      %v749 = vmul.f32 %v453, %v745
      %v750 = vadd.f32 %v734, %v748
      %v751 = vadd.f32 %v735, %v749
      %752 = vrot.lane.b32.xlu0 %v694, 1
      %v753 = vpop.permute.xlu0 %752
      %754 = vrot.lane.b32.xlu0 %v695, 1
      %v755 = vpop.permute.xlu0 %754
      %v756 = vsel %vm462, %v753, %v755
      %v757 = vsel %vm462, %v755, %v753
      %v760 = vrot.slane %v757, 4
      %v761 = vrot.slane %v756, 4
      %v764 = vmul.f32 %v477, %v760
      %v765 = vmul.f32 %v478, %v761
      %v766 = vadd.f32 %v750, %v764
      %v767 = vadd.f32 %v751, %v765
      %768 = vrot.lane.b32.xlu0 %v694, 127
      %v769 = vpop.permute.xlu0 %768
      %770 = vrot.lane.b32.xlu0 %v695, 127
      %v771 = vpop.permute.xlu0 %770
      %v772 = vsel %vm487, %v769, %v771
      %v773 = vsel %vm487, %v771, %v769
      %v776 = vrot.slane %v772, 4
      %v777 = vrot.slane %v773, 4
      %v780 = vmul.f32 %v502, %v776
      %v781 = vmul.f32 %v503, %v777
      %v782 = vadd.f32 %v766, %v780
      %v783 = vadd.f32 %v767, %v781
      %784 = vrot.lane.b32.xlu0 %v694, 113
      %v785 = vpop.permute.xlu0 %784
      %786 = vrot.lane.b32.xlu0 %v695, 113
      %v787 = vpop.permute.xlu0 %786
      %v788 = vsel %vm512, %v785, %v787
      %v789 = vsel %vm512, %v787, %v785
      %v792 = vrot.slane %v788, 4
      %v793 = vrot.slane %v789, 4
      %v796 = vmul.f32 %v527, %v792
      %v797 = vmul.f32 %v528, %v793
      %v798 = vadd.f32 %v782, %v796
      %v799 = vadd.f32 %v783, %v797
      %800 = vrot.lane.b32.xlu0 %v694, 112
      %v801 = vpop.permute.xlu0 %800
      %802 = vrot.lane.b32.xlu0 %v695, 112
      %v803 = vpop.permute.xlu0 %802
      %v804 = vsel %vm537, %v801, %v803
      %v805 = vsel %vm537, %v803, %v801
      %v808 = vrot.slane %v804, 4
      %v809 = vrot.slane %v805, 4
      %v812 = vmul.f32 %v552, %v808
      %v813 = vmul.f32 %v553, %v809
      %v814 = vadd.f32 %v798, %v812
      %v815 = vadd.f32 %v799, %v813
      %816 = vrot.lane.b32.xlu0 %v694, 111
      %v817 = vpop.permute.xlu0 %816
      %818 = vrot.lane.b32.xlu0 %v695, 111
      %v819 = vpop.permute.xlu0 %818
      %v820 = vsel %vm562, %v817, %v819
      %v821 = vsel %vm562, %v819, %v817
      %v824 = vrot.slane %v820, 4
      %v825 = vrot.slane %v821, 4
      %v828 = vmul.f32 %v577, %v824
      %v829 = vmul.f32 %v578, %v825
      %v830 = vadd.f32 %v814, %v828
      %v831 = vadd.f32 %v815, %v829
      %v832 = vadd.f32 %v830, %v586
      %v833 = vadd.f32 %v831, %v586
      %v834 = vmax.f32 %v832, 0.0
      %v835 = vmax.f32 %v833, 0.0
      %v836 = vmin.f32 %v834, 4.0
      %v837 = vmin.f32 %v835, 4.0
      %v838 = vmul.f32 %v836, 63.75
      %v839 = vmul.f32 %v837, 63.75
      %v840 = vround.ne.pseudo %v838
      %v841 = vround.ne.pseudo %v839
      %v842 = vmul.f32 %v840, 0.015686275
      %v843 = vmul.f32 %v841, 0.015686275
      %844 = vst [vmem:[%s251 + $0x20] sm:$0xf0] %v842
      %845 = vst [vmem:[%s251 + $0x28] sm:$0xf0] %v843
      %v846 = vld [vmem:[%s251] sm:$0xff]
      %v847 = vld [vmem:[%s251 + $0x8] sm:$0xff]
      %v848 = vld [vmem:[%s251 + $0x10] sm:$0xff]
      %v849 = vld [vmem:[%s251 + $0x18] sm:$0xff]
      %v850 = vld [vmem:[%s251 + $0x20] sm:$0xff]
      %v851 = vld [vmem:[%s251 + $0x28] sm:$0xff]
      %v852 = vld [vmem:[%s251 + $0x30] sm:$0xff]
      %v853 = vld [vmem:[%s251 + $0x38] sm:$0xff]
      %855 = vset.pattern.permute.xlu0 0
      %856 = vperm.xlu0 %855, %v267
      %v857 = vpop.permute.xlu0 %856
      %v860 = vsel %vm289, %v265, 0
      %862 = vmatprep.subr.mxu0 %v847
      %863 = vmatpush1.msra.mxu0 %v846
      %864 = vmatprep.subr.mxu0 %v849
      %865 = vmatpush1.msra.mxu0 %v848
      %866 = vmatprep.subr.mxu0 %v851
      %867 = vmatpush1.msra.mxu0 %v850
      %868 = vmatprep.subr.mxu0 %v853
      %869 = vmatpush1.msra.mxu0 %v852
      %870 = vmatprep.subr.mxu0 0.0
      %871 = vmatpush1.msra.mxu0 0.0
      %872 = vmatprep.subr.mxu0 0.0
      %873 = vmatpush1.msra.mxu0 0.0
      %874 = vmatprep.subr.mxu0 0.0
      %875 = vmatpush1.msra.mxu0 0.0
      %876 = vmatprep.subr.mxu0 0.0
      %877 = vmatpush1.msra.mxu0 0.0
      %878 = vmatprep.subr.mxu0 0.0
      %879 = vmatpush1.msra.mxu0 0.0
      %880 = vmatprep.subr.mxu0 0.0
      %881 = vmatpush1.msra.mxu0 0.0
      %882 = vmatprep.subr.mxu0 0.0
      %883 = vmatpush1.msra.mxu0 0.0
      %884 = vmatprep.subr.mxu0 0.0
      %885 = vmatpush1.msra.mxu0 0.0
      %886 = vmatprep.subr.mxu0 0.0
      %887 = vmatpush1.msra.mxu0 0.0
      %888 = vmatprep.subr.mxu0 0.0
      %889 = vmatpush1.msra.mxu0 0.0
      %890 = vmatprep.subr.mxu0 0.0
      %891 = vmatpush1.msra.mxu0 0.0
      %892 = vmatprep.subr.mxu0 0.0
      %893 = vmatpush1.msra.mxu0 0.0
      %894 = vmatprep.subr.mxu0 0.0
      %895 = vmatpush1.msra.mxu0 0.0
      %896 = vmatprep.subr.mxu0 0.0
      %897 = vmatpush1.msra.mxu0 0.0
      %898 = vmatprep.subr.mxu0 0.0
      %899 = vmatpush1.msra.mxu0 0.0
      %900 = vmatprep.subr.mxu0 0.0
      %901 = vmatpush1.msra.mxu0 0.0
      %902 = vmatprep.subr.mxu0 0.0
      %903 = vmatpush1.msra.mxu0 0.0
      %904 = vmatprep.subr.mxu0 0.0
      %905 = vmatpush1.msra.mxu0 0.0
      %906 = vmatprep.subr.mxu0 0.0
      %907 = vmatpush1.msra.mxu0 0.0
      %908 = vmatprep.subr.mxu0 0.0
      %909 = vmatpush1.msra.mxu0 0.0
      %910 = vmatprep.subr.mxu0 0.0
      %911 = vmatpush1.msra.mxu0 0.0
      %912 = vmatprep.subr.mxu0 0.0
      %913 = vmatpush1.msra.mxu0 0.0
      %914 = vmatprep.subr.mxu0 0.0
      %915 = vmatpush1.msra.mxu0 0.0
      %916 = vmatprep.subr.mxu0 0.0
      %917 = vmatpush1.msra.mxu0 0.0
      %918 = vmatprep.subr.mxu0 0.0
      %919 = vmatpush1.msra.mxu0 0.0
      %920 = vmatprep.subr.mxu0 0.0
      %921 = vmatpush1.msra.mxu0 0.0
      %922 = vmatprep.subr.mxu0 0.0
      %923 = vmatpush1.msra.mxu0 0.0
      %924 = vmatprep.subr.mxu0 0.0
      %925 = vmatpush1.msra.mxu0 0.0
      %926 = vmatprep.mubr.f32.mxu0 0.0
      %927 = vmatmul.mubr.f32.gmra.mrb[0].mxu0 %v860
      %v928 = vpop.f32.mrb[0].mxu0
      %v929 = vadd.f32 %v857, %v928
      %v930 = vpop.f32.mrb[0].mxu0
      %v931 = vadd.f32 %v857, %v930
      %932 = vdwg.mxu0
      %v933 = vmax.f32 %v929, 0.0
      %v934 = vmax.f32 %v931, 0.0
      %v935 = vmin.f32 %v933, 4.0
      %v936 = vmin.f32 %v934, 4.0
      %v937 = vmul.f32 %v935, 63.75
      %v938 = vmul.f32 %v936, 63.75
      %v939 = vround.ne.pseudo %v937
      %v940 = vround.ne.pseudo %v938
      %v941 = vmul.f32 %v939, 0.015686275
      %v942 = vmul.f32 %v940, 0.015686275
      %944 = vset.pattern.permute.xlu0 4
      %945 = vperm.xlu0 %944, %v269
      %v946 = vpop.permute.xlu0 %945
      %v948 = vmul.f32 %v946, %v941
      %v949 = vmul.f32 %v946, %v942
      %950 = vrot.lane.b32.xlu0 %v941, 17
      %v951 = vpop.permute.xlu0 %950
      %952 = vrot.lane.b32.xlu0 %v942, 17
      %v953 = vpop.permute.xlu0 %952
      %v954 = vsel %vm387, %v951, %v953
      %v955 = vsel %vm387, %v953, %v951
      %956 = vset.pattern.permute.xlu0 0
      %957 = vperm.xlu0 %956, %v269
      %v958 = vpop.permute.xlu0 %957
      %v960 = vmul.f32 %v958, %v397
      %v961 = vmul.f32 %v958, %v401
      %v962 = vmul.f32 %v960, %v955
      %v963 = vmul.f32 %v961, %v954
      %v964 = vadd.f32 %v948, %v962
      %v965 = vadd.f32 %v949, %v963
      %966 = vrot.lane.b32.xlu0 %v941, 16
      %v967 = vpop.permute.xlu0 %966
      %968 = vrot.lane.b32.xlu0 %v942, 16
      %v969 = vpop.permute.xlu0 %968
      %v970 = vsel %vm412, %v967, %v969
      %v971 = vsel %vm412, %v969, %v967
      %972 = vset.pattern.permute.xlu0 1
      %973 = vperm.xlu0 %972, %v269
      %v974 = vpop.permute.xlu0 %973
      %v976 = vmul.f32 %v974, %v422
      %v977 = vmul.f32 %v974, %v426
      %v978 = vmul.f32 %v976, %v971
      %v979 = vmul.f32 %v977, %v970
      %v980 = vadd.f32 %v964, %v978
      %v981 = vadd.f32 %v965, %v979
      %982 = vrot.lane.b32.xlu0 %v941, 15
      %v983 = vpop.permute.xlu0 %982
      %984 = vrot.lane.b32.xlu0 %v942, 15
      %v985 = vpop.permute.xlu0 %984
      %v986 = vsel %vm437, %v983, %v985
      %v987 = vsel %vm437, %v985, %v983
      %988 = vset.pattern.permute.xlu0 2
      %989 = vperm.xlu0 %988, %v269
      %v990 = vpop.permute.xlu0 %989
      %v992 = vmul.f32 %v990, %v447
      %v993 = vmul.f32 %v990, %v451
      %v994 = vmul.f32 %v992, %v987
      %v995 = vmul.f32 %v993, %v986
      %v996 = vadd.f32 %v980, %v994
      %v997 = vadd.f32 %v981, %v995
      %998 = vrot.lane.b32.xlu0 %v941, 1
      %v999 = vpop.permute.xlu0 %998
      %1000 = vrot.lane.b32.xlu0 %v942, 1
      %v1001 = vpop.permute.xlu0 %1000
      %v1002 = vsel %vm462, %v999, %v1001
      %v1003 = vsel %vm462, %v1001, %v999
      %1004 = vset.pattern.permute.xlu0 3
      %1005 = vperm.xlu0 %1004, %v269
      %v1006 = vpop.permute.xlu0 %1005
      %v1008 = vmul.f32 %v1006, %v472
      %v1009 = vmul.f32 %v1006, %v476
      %v1010 = vmul.f32 %v1008, %v1003
      %v1011 = vmul.f32 %v1009, %v1002
      %v1012 = vadd.f32 %v996, %v1010
      %v1013 = vadd.f32 %v997, %v1011
      %1014 = vrot.lane.b32.xlu0 %v941, 127
      %v1015 = vpop.permute.xlu0 %1014
      %1016 = vrot.lane.b32.xlu0 %v942, 127
      %v1017 = vpop.permute.xlu0 %1016
      %v1018 = vsel %vm487, %v1015, %v1017
      %v1019 = vsel %vm487, %v1017, %v1015
      %1020 = vset.pattern.permute.xlu0 5
      %1021 = vperm.xlu0 %1020, %v269
      %v1022 = vpop.permute.xlu0 %1021
      %v1024 = vmul.f32 %v1022, %v497
      %v1025 = vmul.f32 %v1022, %v501
      %v1026 = vmul.f32 %v1024, %v1018
      %v1027 = vmul.f32 %v1025, %v1019
      %v1028 = vadd.f32 %v1012, %v1026
      %v1029 = vadd.f32 %v1013, %v1027
      %1030 = vrot.lane.b32.xlu0 %v941, 113
      %v1031 = vpop.permute.xlu0 %1030
      %1032 = vrot.lane.b32.xlu0 %v942, 113
      %v1033 = vpop.permute.xlu0 %1032
      %v1034 = vsel %vm512, %v1031, %v1033
      %v1035 = vsel %vm512, %v1033, %v1031
      %1036 = vset.pattern.permute.xlu0 6
      %1037 = vperm.xlu0 %1036, %v269
      %v1038 = vpop.permute.xlu0 %1037
      %v1040 = vmul.f32 %v1038, %v522
      %v1041 = vmul.f32 %v1038, %v526
      %v1042 = vmul.f32 %v1040, %v1034
      %v1043 = vmul.f32 %v1041, %v1035
      %v1044 = vadd.f32 %v1028, %v1042
      %v1045 = vadd.f32 %v1029, %v1043
      %1046 = vrot.lane.b32.xlu0 %v941, 112
      %v1047 = vpop.permute.xlu0 %1046
      %1048 = vrot.lane.b32.xlu0 %v942, 112
      %v1049 = vpop.permute.xlu0 %1048
      %v1050 = vsel %vm537, %v1047, %v1049
      %v1051 = vsel %vm537, %v1049, %v1047
      %1052 = vset.pattern.permute.xlu0 7
      %1053 = vperm.xlu0 %1052, %v269
      %v1054 = vpop.permute.xlu0 %1053
      %v1056 = vmul.f32 %v1054, %v547
      %v1057 = vmul.f32 %v1054, %v551
      %v1058 = vmul.f32 %v1056, %v1050
      %v1059 = vmul.f32 %v1057, %v1051
      %v1060 = vadd.f32 %v1044, %v1058
      %v1061 = vadd.f32 %v1045, %v1059
      %1062 = vrot.lane.b32.xlu0 %v941, 111
      %v1063 = vpop.permute.xlu0 %1062
      %1064 = vrot.lane.b32.xlu0 %v942, 111
      %v1065 = vpop.permute.xlu0 %1064
      %v1066 = vsel %vm562, %v1063, %v1065
      %v1067 = vsel %vm562, %v1065, %v1063
      %1068 = vset.pattern.permute.xlu0 8
      %1069 = vperm.xlu0 %1068, %v269
      %v1070 = vpop.permute.xlu0 %1069
      %v1072 = vmul.f32 %v1070, %v572
      %v1073 = vmul.f32 %v1070, %v576
      %v1074 = vmul.f32 %v1072, %v1066
      %v1075 = vmul.f32 %v1073, %v1067
      %v1076 = vadd.f32 %v1060, %v1074
      %v1077 = vadd.f32 %v1061, %v1075
      %1079 = vset.pattern.permute.xlu0 0
      %1080 = vperm.xlu0 %1079, %v271
      %v1081 = vpop.permute.xlu0 %1080
      %v1083 = vadd.f32 %v1076, %v1081
      %v1084 = vadd.f32 %v1077, %v1081
      %v1085 = vmax.f32 %v1083, 0.0
      %v1086 = vmax.f32 %v1084, 0.0
      %v1087 = vmin.f32 %v1085, 4.0
      %v1088 = vmin.f32 %v1086, 4.0
      %v1089 = vmul.f32 %v1087, 63.75
      %v1090 = vmul.f32 %v1088, 63.75
      %v1091 = vround.ne.pseudo %v1089
      %v1092 = vround.ne.pseudo %v1090
      %v1093 = vmul.f32 %v1091, 0.015686275
      %v1094 = vmul.f32 %v1092, 0.015686275
      %1095 = vst [vmem:[%s251 + $0x30] sm:$0xf] %v1093
      %1096 = vst [vmem:[%s251 + $0x38] sm:$0xf] %v1094
      %v1097 = vld [vmem:[%s251] sm:$0xff]
      %v1098 = vld [vmem:[%s251 + $0x8] sm:$0xff]
      %v1099 = vld [vmem:[%s251 + $0x10] sm:$0xff]
      %v1100 = vld [vmem:[%s251 + $0x18] sm:$0xff]
      %v1101 = vld [vmem:[%s251 + $0x20] sm:$0xff]
      %v1102 = vld [vmem:[%s251 + $0x28] sm:$0xff]
      %v1103 = vld [vmem:[%s251 + $0x30] sm:$0xff]
      %v1104 = vld [vmem:[%s251 + $0x38] sm:$0xff]
      %v1105 = vrot.slane %v265, 4
      %v1106 = vrot.slane %v857, 4
      %v1108 = vsel %vm289, %v1105, 0
      %1110 = vmatprep.subr.mxu0 %v1098
      %1111 = vmatpush1.msra.mxu0 %v1097
      %1112 = vmatprep.subr.mxu0 %v1100
      %1113 = vmatpush1.msra.mxu0 %v1099
      %1114 = vmatprep.subr.mxu0 %v1102
      %1115 = vmatpush1.msra.mxu0 %v1101
      %1116 = vmatprep.subr.mxu0 %v1104
      %1117 = vmatpush1.msra.mxu0 %v1103
      %1118 = vmatprep.subr.mxu0 0.0
      %1119 = vmatpush1.msra.mxu0 0.0
      %1120 = vmatprep.subr.mxu0 0.0
      %1121 = vmatpush1.msra.mxu0 0.0
      %1122 = vmatprep.subr.mxu0 0.0
      %1123 = vmatpush1.msra.mxu0 0.0
      %1124 = vmatprep.subr.mxu0 0.0
      %1125 = vmatpush1.msra.mxu0 0.0
      %1126 = vmatprep.subr.mxu0 0.0
      %1127 = vmatpush1.msra.mxu0 0.0
      %1128 = vmatprep.subr.mxu0 0.0
      %1129 = vmatpush1.msra.mxu0 0.0
      %1130 = vmatprep.subr.mxu0 0.0
      %1131 = vmatpush1.msra.mxu0 0.0
      %1132 = vmatprep.subr.mxu0 0.0
      %1133 = vmatpush1.msra.mxu0 0.0
      %1134 = vmatprep.subr.mxu0 0.0
      %1135 = vmatpush1.msra.mxu0 0.0
      %1136 = vmatprep.subr.mxu0 0.0
      %1137 = vmatpush1.msra.mxu0 0.0
      %1138 = vmatprep.subr.mxu0 0.0
      %1139 = vmatpush1.msra.mxu0 0.0
      %1140 = vmatprep.subr.mxu0 0.0
      %1141 = vmatpush1.msra.mxu0 0.0
      %1142 = vmatprep.subr.mxu0 0.0
      %1143 = vmatpush1.msra.mxu0 0.0
      %1144 = vmatprep.subr.mxu0 0.0
      %1145 = vmatpush1.msra.mxu0 0.0
      %1146 = vmatprep.subr.mxu0 0.0
      %1147 = vmatpush1.msra.mxu0 0.0
      %1148 = vmatprep.subr.mxu0 0.0
      %1149 = vmatpush1.msra.mxu0 0.0
      %1150 = vmatprep.subr.mxu0 0.0
      %1151 = vmatpush1.msra.mxu0 0.0
      %1152 = vmatprep.subr.mxu0 0.0
      %1153 = vmatpush1.msra.mxu0 0.0
      %1154 = vmatprep.subr.mxu0 0.0
      %1155 = vmatpush1.msra.mxu0 0.0
      %1156 = vmatprep.subr.mxu0 0.0
      %1157 = vmatpush1.msra.mxu0 0.0
      %1158 = vmatprep.subr.mxu0 0.0
      %1159 = vmatpush1.msra.mxu0 0.0
      %1160 = vmatprep.subr.mxu0 0.0
      %1161 = vmatpush1.msra.mxu0 0.0
      %1162 = vmatprep.subr.mxu0 0.0
      %1163 = vmatpush1.msra.mxu0 0.0
      %1164 = vmatprep.subr.mxu0 0.0
      %1165 = vmatpush1.msra.mxu0 0.0
      %1166 = vmatprep.subr.mxu0 0.0
      %1167 = vmatpush1.msra.mxu0 0.0
      %1168 = vmatprep.subr.mxu0 0.0
      %1169 = vmatpush1.msra.mxu0 0.0
      %1170 = vmatprep.subr.mxu0 0.0
      %1171 = vmatpush1.msra.mxu0 0.0
      %1172 = vmatprep.subr.mxu0 0.0
      %1173 = vmatpush1.msra.mxu0 0.0
      %1174 = vmatprep.mubr.f32.mxu0 0.0
      %1175 = vmatmul.mubr.f32.gmra.mrb[0].mxu0 %v1108
      %v1176 = vpop.f32.mrb[0].mxu0
      %v1177 = vadd.f32 %v1106, %v1176
      %v1178 = vpop.f32.mrb[0].mxu0
      %v1179 = vadd.f32 %v1106, %v1178
      %1180 = vdwg.mxu0
      %v1181 = vmax.f32 %v1177, 0.0
      %v1182 = vmax.f32 %v1179, 0.0
      %v1183 = vmin.f32 %v1181, 4.0
      %v1184 = vmin.f32 %v1182, 4.0
      %v1185 = vmul.f32 %v1183, 63.75
      %v1186 = vmul.f32 %v1184, 63.75
      %v1187 = vround.ne.pseudo %v1185
      %v1188 = vround.ne.pseudo %v1186
      %v1189 = vmul.f32 %v1187, 0.015686275
      %v1190 = vmul.f32 %v1188, 0.015686275
      %v1193 = vrot.slane %v1189, 4
      %v1194 = vrot.slane %v1190, 4
      %v1197 = vmul.f32 %v946, %v1193
      %v1198 = vmul.f32 %v946, %v1194
      %1199 = vrot.lane.b32.xlu0 %v1189, 17
      %v1200 = vpop.permute.xlu0 %1199
      %1201 = vrot.lane.b32.xlu0 %v1190, 17
      %v1202 = vpop.permute.xlu0 %1201
      %v1203 = vsel %vm387, %v1200, %v1202
      %v1204 = vsel %vm387, %v1202, %v1200
      %v1207 = vrot.slane %v1204, 4
      %v1208 = vrot.slane %v1203, 4
      %v1211 = vmul.f32 %v960, %v1207
      %v1212 = vmul.f32 %v961, %v1208
      %v1213 = vadd.f32 %v1197, %v1211
      %v1214 = vadd.f32 %v1198, %v1212
      %1215 = vrot.lane.b32.xlu0 %v1189, 16
      %v1216 = vpop.permute.xlu0 %1215
      %1217 = vrot.lane.b32.xlu0 %v1190, 16
      %v1218 = vpop.permute.xlu0 %1217
      %v1219 = vsel %vm412, %v1216, %v1218
      %v1220 = vsel %vm412, %v1218, %v1216
      %v1223 = vrot.slane %v1220, 4
      %v1224 = vrot.slane %v1219, 4
      %v1227 = vmul.f32 %v976, %v1223
      %v1228 = vmul.f32 %v977, %v1224
      %v1229 = vadd.f32 %v1213, %v1227
      %v1230 = vadd.f32 %v1214, %v1228
      %1231 = vrot.lane.b32.xlu0 %v1189, 15
      %v1232 = vpop.permute.xlu0 %1231
      %1233 = vrot.lane.b32.xlu0 %v1190, 15
      %v1234 = vpop.permute.xlu0 %1233
      %v1235 = vsel %vm437, %v1232, %v1234
      %v1236 = vsel %vm437, %v1234, %v1232
      %v1239 = vrot.slane %v1236, 4
      %v1240 = vrot.slane %v1235, 4
      %v1243 = vmul.f32 %v992, %v1239
      %v1244 = vmul.f32 %v993, %v1240
      %v1245 = vadd.f32 %v1229, %v1243
      %v1246 = vadd.f32 %v1230, %v1244
      %1247 = vrot.lane.b32.xlu0 %v1189, 1
      %v1248 = vpop.permute.xlu0 %1247
      %1249 = vrot.lane.b32.xlu0 %v1190, 1
      %v1250 = vpop.permute.xlu0 %1249
      %v1251 = vsel %vm462, %v1248, %v1250
      %v1252 = vsel %vm462, %v1250, %v1248
      %v1255 = vrot.slane %v1252, 4
      %v1256 = vrot.slane %v1251, 4
      %v1259 = vmul.f32 %v1008, %v1255
      %v1260 = vmul.f32 %v1009, %v1256
      %v1261 = vadd.f32 %v1245, %v1259
      %v1262 = vadd.f32 %v1246, %v1260
      %1263 = vrot.lane.b32.xlu0 %v1189, 127
      %v1264 = vpop.permute.xlu0 %1263
      %1265 = vrot.lane.b32.xlu0 %v1190, 127
      %v1266 = vpop.permute.xlu0 %1265
      %v1267 = vsel %vm487, %v1264, %v1266
      %v1268 = vsel %vm487, %v1266, %v1264
      %v1271 = vrot.slane %v1267, 4
      %v1272 = vrot.slane %v1268, 4
      %v1275 = vmul.f32 %v1024, %v1271
      %v1276 = vmul.f32 %v1025, %v1272
      %v1277 = vadd.f32 %v1261, %v1275
      %v1278 = vadd.f32 %v1262, %v1276
      %1279 = vrot.lane.b32.xlu0 %v1189, 113
      %v1280 = vpop.permute.xlu0 %1279
      %1281 = vrot.lane.b32.xlu0 %v1190, 113
      %v1282 = vpop.permute.xlu0 %1281
      %v1283 = vsel %vm512, %v1280, %v1282
      %v1284 = vsel %vm512, %v1282, %v1280
      %v1287 = vrot.slane %v1283, 4
      %v1288 = vrot.slane %v1284, 4
      %v1291 = vmul.f32 %v1040, %v1287
      %v1292 = vmul.f32 %v1041, %v1288
      %v1293 = vadd.f32 %v1277, %v1291
      %v1294 = vadd.f32 %v1278, %v1292
      %1295 = vrot.lane.b32.xlu0 %v1189, 112
      %v1296 = vpop.permute.xlu0 %1295
      %1297 = vrot.lane.b32.xlu0 %v1190, 112
      %v1298 = vpop.permute.xlu0 %1297
      %v1299 = vsel %vm537, %v1296, %v1298
      %v1300 = vsel %vm537, %v1298, %v1296
      %v1303 = vrot.slane %v1299, 4
      %v1304 = vrot.slane %v1300, 4
      %v1307 = vmul.f32 %v1056, %v1303
      %v1308 = vmul.f32 %v1057, %v1304
      %v1309 = vadd.f32 %v1293, %v1307
      %v1310 = vadd.f32 %v1294, %v1308
      %1311 = vrot.lane.b32.xlu0 %v1189, 111
      %v1312 = vpop.permute.xlu0 %1311
      %1313 = vrot.lane.b32.xlu0 %v1190, 111
      %v1314 = vpop.permute.xlu0 %1313
      %v1315 = vsel %vm562, %v1312, %v1314
      %v1316 = vsel %vm562, %v1314, %v1312
      %v1319 = vrot.slane %v1315, 4
      %v1320 = vrot.slane %v1316, 4
      %v1323 = vmul.f32 %v1072, %v1319
      %v1324 = vmul.f32 %v1073, %v1320
      %v1325 = vadd.f32 %v1309, %v1323
      %v1326 = vadd.f32 %v1310, %v1324
      %v1327 = vadd.f32 %v1325, %v1081
      %v1328 = vadd.f32 %v1326, %v1081
      %v1329 = vmax.f32 %v1327, 0.0
      %v1330 = vmax.f32 %v1328, 0.0
      %v1331 = vmin.f32 %v1329, 4.0
      %v1332 = vmin.f32 %v1330, 4.0
      %v1333 = vmul.f32 %v1331, 63.75
      %v1334 = vmul.f32 %v1332, 63.75
      %v1335 = vround.ne.pseudo %v1333
      %v1336 = vround.ne.pseudo %v1334
      %v1337 = vmul.f32 %v1335, 0.015686275
      %v1338 = vmul.f32 %v1336, 0.015686275
      %1339 = vst [vmem:[%s251 + $0x30] sm:$0xf0] %v1337
      %1340 = vst [vmem:[%s251 + $0x38] sm:$0xf0] %v1338
      %p1341 = scmp.lt.s32.totalorder %s17, 1
      %s1342 = scalar_select %p1341, %s17, 1
      %s1343 = smul.addr %s1342, 8
      %s1344 = smul.addr %s1343, 8
      %s1345 = scalar_lea.vmem %s6, %s1344
      // Predicated region
      $region45: #{dense_block_forward.1} parent=43 // pred_check
        %p1346 = pneg %p166
      $region46: #{dense_block_forward.1} parent=43 // pred_check_branch
        %1348 = sbr.rel (%p1346) target = $region48
      $region47: #{dense_block_forward.1} parent=43 // pred_region
        _
      $region48: #{dense_block_forward.1} parent=43 // pred_fallthru
        _
    $region44: #{dense_block_forward.1} parent=5 // pred_fallthru
      _
    %p1349 = scmp.le.s32.totalorder 2, %s12
    // Predicated region
    $region49: #{dense_block_forward.1} parent=5 // pred_check
      %p1350 = pneg %p1349
    $region50: #{dense_block_forward.1} parent=5 // pred_check_branch
      %1352 = sbr.rel (%p1350) target = $region52
    $region51: #{dense_block_forward.1} parent=5 // pred_region
      %s1353 = ssub.s32 %s12, 2
      // Predicated region
      $region53: #{dense_block_forward.1} parent=51 // pred_check
        %p1354 = pneg %p172
      $region54: #{dense_block_forward.1} parent=51 // pred_check_branch
        %1356 = sbr.rel (%p1354) target = $region56
      $region55: #{dense_block_forward.1} parent=51 // pred_region
        %p1357 = scmp.lt.s32.totalorder %s18, 1
        %s1358 = scalar_select %p1357, %s18, 1
        %s1359 = smul.addr %s1358, 8
        %s1360 = smul.addr %s1359, 8
        %s1361 = scalar_lea.vmem %s6, %s1360
      $region56: #{dense_block_forward.1} parent=51 // pred_fallthru
        _
    $region52: #{dense_block_forward.1} parent=5 // pred_fallthru
      _
  $region6: #{dense_block_forward.1} parent=0 // loop_footer
    %s16 = sadd.s32 1, %s12
  $region7: #{dense_block_forward.1} parent=0 // loop_footer_branch
    %11 = sbr.rel target = $region3
  $region8: #{dense_block_forward.1} parent=0 // loop_exit
    _

</llo_original>
